<compile_context>
chip_gen: v7x
topology: tpu7x:2x2x1
jax: 0.10.0
libtpu: 0.0.40
codegen_flags: <defaults>
</compile_context>

<pallas_src>
import jax
import jax.numpy as jnp
from jax.experimental import pallas as pl
from jax.experimental.pallas import tpu as pltpu


# ----------------------------------------------------------------------------
# Fused kernel
# ----------------------------------------------------------------------------
def audio_fused_kernel(x_ref, w1_ref, b1_ref, w2_ref, b2_ref,
                       wf1_ref, bf1_ref, wf2_ref, bf2_ref,
                       o_ref, pad1_ref, pad2_ref, fcin_ref):
    """Full AudioClassifier forward for the whole batch.

    x_ref   : (N, L, 13)       input, length on sublanes / channels on lanes
    w1_ref  : (3, 13, 32)      conv1 taps (BN1 folded)      b1_ref: (1, 32)
    w2_ref  : (3, 32, 64)      conv2 taps (BN2 folded)      b2_ref: (1, 64)
    wf1_ref : (L/4*64, 64)     fc1 weight (rows l*64+c)     bf1_ref: (1, 64)
    wf2_ref : (64, K)          fc2 weight                   bf2_ref: (1, K)
    o_ref   : (N, K)           logits
    pad1_ref: (L+2, 13)        VMEM staging buffer (padded conv1 input)
    pad2_ref: (L/2+2, 32)      VMEM staging buffer (padded conv2 input)
    fcin_ref: (N, 64)          VMEM staging buffer (fc1 pre-activation)
    """
    N, L, Cin = x_ref.shape
    L2, L4 = L // 2, L // 4
    C1 = b1_ref.shape[1]
    C2 = b2_ref.shape[1]

    # 0/1 selection matrices that compact even / odd rows (MaxPool without scratch).
    def pool_sel(lout):
        lin = 2 * lout
        r = jax.lax.broadcasted_iota(jnp.int32, (lout, lin), 0)
        c = jax.lax.broadcasted_iota(jnp.int32, (lout, lin), 1)
        return ((c == 2 * r).astype(jnp.float32),
                (c == 2 * r + 1).astype(jnp.float32))

    s1e, s1o = pool_sel(L2)
    s2e, s2o = pool_sel(L4)

    # Zero the padding rows of the staging buffers once (interior rows are fully
    # overwritten every batch iteration).
    pad1_ref[0:1, :] = jnp.zeros((1, Cin), jnp.float32)
    pad1_ref[L + 1:L + 2, :] = jnp.zeros((1, Cin), jnp.float32)
    pad2_ref[0:1, :] = jnp.zeros((1, C1), jnp.float32)
    pad2_ref[L2 + 1:L2 + 2, :] = jnp.zeros((1, C1), jnp.float32)

    def conv_relu_pool(pad_ref, lin, w_ref, b_ref, se, so):
        # Conv1d(k=3, pad=1) as 3 shifted MXU matmuls; acc initialized by tap 0.
        acc = jnp.dot(pad_ref[0:lin, :], w_ref[0],
                      preferred_element_type=jnp.float32)
        acc += jnp.dot(pad_ref[1:lin + 1, :], w_ref[1],
                       preferred_element_type=jnp.float32)
        acc += jnp.dot(pad_ref[2:lin + 2, :], w_ref[2],
                       preferred_element_type=jnp.float32)
        act = jnp.maximum(acc + b_ref[...], 0.0)            # (lin, Cout)
        # MaxPool1d(2,2) in registers: compact even/odd rows via selection matmuls.
        even = jnp.dot(se, act, preferred_element_type=jnp.float32)
        odd = jnp.dot(so, act, preferred_element_type=jnp.float32)
        return jnp.maximum(even, odd)                        # (lin//2, Cout)

    for n in range(N):  # static, unrolled; whole net per element stays on-chip
        # conv block 1
        pad1_ref[1:L + 1, :] = x_ref[n]
        p1 = conv_relu_pool(pad1_ref, L, w1_ref, b1_ref, s1e, s1o)    # (L2, 32)
        # conv block 2 (pooled output written straight into the padded staging buffer)
        pad2_ref[1:L2 + 1, :] = p1
        p2 = conv_relu_pool(pad2_ref, L2, w2_ref, b2_ref, s2e, s2o)   # (L4, 64)
        # fc1 contraction without a flatten reshape: sum over pooled positions l.
        f1 = jnp.dot(p2[0:1, :], wf1_ref[0:C2, :],
                     preferred_element_type=jnp.float32)
        for l in range(1, L4):
            f1 += jnp.dot(p2[l:l + 1, :], wf1_ref[l * C2:(l + 1) * C2, :],
                          preferred_element_type=jnp.float32)
        fcin_ref[n:n + 1, :] = f1                                      # (1, 64)

    # fc1 bias + ReLU + fc2, batched over N.
    h = jnp.maximum(fcin_ref[...] + bf1_ref[...], 0.0)
    o_ref[...] = jnp.dot(h, wf2_ref[...],
                         preferred_element_type=jnp.float32) + bf2_ref[...]


# ----------------------------------------------------------------------------
# Wrapper
# ----------------------------------------------------------------------------
def audio_classifier_forward(x, fp):
    """x: (N, 13, L) float32 (PyTorch NCL). Returns (N, num_classes)."""
    N, Cin, L = x.shape
    C1 = fp["b1"].shape[1]
    H = fp["bf1"].shape[1]
    K = fp["wf2"].shape[1]
    xl = jnp.transpose(x, (0, 2, 1))                         # (N, L, 13): L on sublanes
    vmem = pl.BlockSpec(memory_space=pltpu.MemorySpace.VMEM)
    return pl.pallas_call(
        audio_fused_kernel,
        out_shape=jax.ShapeDtypeStruct((N, K), jnp.float32),
        in_specs=[vmem] * 9,
        out_specs=vmem,
        scratch_shapes=[
            pltpu.VMEM((L + 2, Cin), jnp.float32),           # padded conv1 input
            pltpu.VMEM((L // 2 + 2, C1), jnp.float32),       # padded conv2 input
            pltpu.VMEM((N, H), jnp.float32),                 # fc1 pre-activation
        ],
    )(xl, fp["w1"], fp["b1"], fp["w2"], fp["b2"],
      fp["wf1"], fp["bf1"], fp["wf2"], fp["bf2"])


def fold_conv_bn(w, b, gamma, beta, mean, var, eps=1e-5):
    """Fold eval-mode BatchNorm into conv. PyTorch w: (Cout, Cin, 3) -> (3, Cin, Cout)."""
    scale = gamma / jnp.sqrt(var + eps)                      # (Cout,)
    w_f = jnp.transpose(w, (2, 1, 0)) * scale[None, None, :]
    b_f = ((b - mean) * scale + beta)[None, :]
    return w_f, b_f


# ----------------------------------------------------------------------------
# Pure-JAX reference (mirrors PyTorch ops, eval-mode BN)
# ----------------------------------------------------------------------------
def ref_forward(x, p):
    def conv1d(x_, w, b):                                    # x_: (N, Cin, L)
        L = x_.shape[2]
        xp = jnp.pad(x_, ((0, 0), (0, 0), (1, 1)))
        y = sum(
            jnp.einsum("ncl,dc->ndl", xp[:, :, t:t + L], w[:, :, t]) for t in range(3)
        )
        return y + b[None, :, None]

    def bn(x_, g, bt, mu, var, eps=1e-5):
        return (x_ - mu[None, :, None]) / jnp.sqrt(var[None, :, None] + eps) * g[
            None, :, None
        ] + bt[None, :, None]

    def pool(x_):                                            # (N, C, L)
        N, C, L = x_.shape
        return jnp.max(x_.reshape(N, C, L // 2, 2), axis=3)

    h = pool(jnp.maximum(bn(conv1d(x, p["w1"], p["b1"]), p["g1"], p["be1"], p["m1"], p["v1"]), 0.0))
    h = pool(jnp.maximum(bn(conv1d(h, p["w2"], p["b2"]), p["g2"], p["be2"], p["m2"], p["v2"]), 0.0))
    h = h.reshape(h.shape[0], -1)
    h = jnp.maximum(h @ p["wf1"].T + p["bf1"], 0.0)
    return h @ p["wf2"].T + p["bf2"]


# ----------------------------------------------------------------------------
if __name__ == "__main__":
    N, L, NUM_CLASSES = 2, 16, 8          # input_size = L = 16
    L4 = L // 4

    key = jax.random.PRNGKey(0)
    ks = jax.random.split(key, 17)
    f32 = jnp.float32

    raw = {
        # conv1 / bn1
        "w1": 0.1 * jax.random.normal(ks[0], (32, 13, 3), f32),
        "b1": 0.1 * jax.random.normal(ks[1], (32,), f32),
        "g1": 1.0 + 0.1 * jax.random.normal(ks[2], (32,), f32),
        "be1": 0.1 * jax.random.normal(ks[3], (32,), f32),
        "m1": 0.1 * jax.random.normal(ks[4], (32,), f32),
        "v1": jnp.abs(jax.random.normal(ks[5], (32,), f32)) + 0.5,
        # conv2 / bn2
        "w2": 0.1 * jax.random.normal(ks[6], (64, 32, 3), f32),
        "b2": 0.1 * jax.random.normal(ks[7], (64,), f32),
        "g2": 1.0 + 0.1 * jax.random.normal(ks[8], (64,), f32),
        "be2": 0.1 * jax.random.normal(ks[9], (64,), f32),
        "m2": 0.1 * jax.random.normal(ks[10], (64,), f32),
        "v2": jnp.abs(jax.random.normal(ks[11], (64,), f32)) + 0.5,
        # fc1 / fc2 (PyTorch layout: (out_features, in_features))
        "wf1": 0.05 * jax.random.normal(ks[12], (64, 64 * L4), f32),
        "bf1": 0.05 * jax.random.normal(ks[13], (64,), f32),
        "wf2": 0.05 * jax.random.normal(ks[14], (NUM_CLASSES, 64), f32),
        "bf2": 0.05 * jax.random.normal(ks[15], (NUM_CLASSES,), f32),
    }

    # Fold BN (eval mode) into conv weights and re-layout weights for the kernel.
    w1f, b1f = fold_conv_bn(raw["w1"], raw["b1"], raw["g1"], raw["be1"], raw["m1"], raw["v1"])
    w2f, b2f = fold_conv_bn(raw["w2"], raw["b2"], raw["g2"], raw["be2"], raw["m2"], raw["v2"])
    # fc1 columns are indexed c*L4+l in PyTorch flatten; our pooled layout is l-major/c-minor.
    wf1 = jnp.transpose(raw["wf1"].reshape(64, 64, L4), (2, 1, 0)).reshape(L4 * 64, 64)
    folded = {
        "w1": w1f, "b1": b1f,
        "w2": w2f, "b2": b2f,
        "wf1": wf1, "bf1": raw["bf1"][None, :],
        "wf2": raw["wf2"].T, "bf2": raw["bf2"][None, :],
    }

    x = jax.random.normal(ks[16], (N, 13, L), f32)

    out = jax.block_until_ready(audio_classifier_forward(x, folded))
    ref = ref_forward(x, raw)

    assert out.shape == (N, NUM_CLASSES)
    assert jnp.allclose(out, ref, atol=2e-3, rtol=2e-3), (
        f"max abs err = {jnp.max(jnp.abs(out - ref))}"
    )
    print("KERNEL_OK")
</pallas_src>

<mosaic_0001>
module attributes {stable_mosaic.version = 11 : i64} {
  func.func @audio_fused_kernel(%arg0: memref<2x16x13xf32, #tpu.memory_space<vmem>>, %arg1: memref<3x13x32xf32, #tpu.memory_space<vmem>>, %arg2: memref<1x32xf32, #tpu.memory_space<vmem>>, %arg3: memref<3x32x64xf32, #tpu.memory_space<vmem>>, %arg4: memref<1x64xf32, #tpu.memory_space<vmem>>, %arg5: memref<256x64xf32, #tpu.memory_space<vmem>>, %arg6: memref<1x64xf32, #tpu.memory_space<vmem>>, %arg7: memref<64x8xf32, #tpu.memory_space<vmem>>, %arg8: memref<1x8xf32, #tpu.memory_space<vmem>>, %arg9: memref<2x8xf32, #tpu.memory_space<vmem>>, %arg10: memref<18x13xf32, #tpu.memory_space<vmem>>, %arg11: memref<10x32xf32, #tpu.memory_space<vmem>>, %arg12: memref<2x64xf32, #tpu.memory_space<vmem>>) attributes {dimension_semantics = [], scalar_prefetch = 0 : i64, scratch_operands = 3 : i64, tpu.core_type = #tpu.core_type<tc>} {
    %0 = tpu.iota {dimensions = array<i32: 0>} : vector<8x16xi32>
    %1 = tpu.iota {dimensions = array<i32: 1>} : vector<8x16xi32>
    %c2_i32 = arith.constant 2 : i32
    %2 = vector.broadcast %c2_i32 : i32 to vector<8x16xi32>
    %3 = arith.muli %2, %0 : vector<8x16xi32>
    %4 = arith.cmpi eq, %1, %3 : vector<8x16xi32>
    %5 = arith.extui %4 : vector<8x16xi1> to vector<8x16xi32>
    %6 = arith.sitofp %5 : vector<8x16xi32> to vector<8x16xf32>
    %c2_i32_0 = arith.constant 2 : i32
    %7 = vector.broadcast %c2_i32_0 : i32 to vector<8x16xi32>
    %8 = arith.muli %7, %0 : vector<8x16xi32>
    %c1_i32 = arith.constant 1 : i32
    %9 = vector.broadcast %c1_i32 : i32 to vector<8x16xi32>
    %10 = arith.addi %8, %9 : vector<8x16xi32>
    %11 = arith.cmpi eq, %1, %10 : vector<8x16xi32>
    %12 = arith.extui %11 : vector<8x16xi1> to vector<8x16xi32>
    %13 = arith.sitofp %12 : vector<8x16xi32> to vector<8x16xf32>
    %14 = tpu.iota {dimensions = array<i32: 0>} : vector<4x8xi32>
    %15 = tpu.iota {dimensions = array<i32: 1>} : vector<4x8xi32>
    %c2_i32_1 = arith.constant 2 : i32
    %16 = vector.broadcast %c2_i32_1 : i32 to vector<4x8xi32>
    %17 = arith.muli %16, %14 : vector<4x8xi32>
    %18 = arith.cmpi eq, %15, %17 : vector<4x8xi32>
    %19 = arith.extui %18 : vector<4x8xi1> to vector<4x8xi32>
    %20 = arith.sitofp %19 : vector<4x8xi32> to vector<4x8xf32>
    %c2_i32_2 = arith.constant 2 : i32
    %21 = vector.broadcast %c2_i32_2 : i32 to vector<4x8xi32>
    %22 = arith.muli %21, %14 : vector<4x8xi32>
    %c1_i32_3 = arith.constant 1 : i32
    %23 = vector.broadcast %c1_i32_3 : i32 to vector<4x8xi32>
    %24 = arith.addi %22, %23 : vector<4x8xi32>
    %25 = arith.cmpi eq, %15, %24 : vector<4x8xi32>
    %26 = arith.extui %25 : vector<4x8xi1> to vector<4x8xi32>
    %27 = arith.sitofp %26 : vector<4x8xi32> to vector<4x8xf32>
    %cst = arith.constant 0.000000e+00 : f32
    %28 = vector.broadcast %cst : f32 to vector<1x13xf32>
    %c0 = arith.constant 0 : index
    %c0_4 = arith.constant 0 : index
    %29 = vector.load %arg10[%c0, %c0_4] : memref<18x13xf32, #tpu.memory_space<vmem>>, vector<1x13xf32>
    tpu.vector_store %arg10[%c0, %c0_4], %28 {strides = array<i32>} : memref<18x13xf32, #tpu.memory_space<vmem>>, vector<1x13xf32>,
    %cst_5 = arith.constant 0.000000e+00 : f32
    %30 = vector.broadcast %cst_5 : f32 to vector<1x13xf32>
    %c17 = arith.constant 17 : index
    %c0_6 = arith.constant 0 : index
    %31 = vector.load %arg10[%c17, %c0_6] : memref<18x13xf32, #tpu.memory_space<vmem>>, vector<1x13xf32>
    tpu.vector_store %arg10[%c17, %c0_6], %30 {strides = array<i32>} : memref<18x13xf32, #tpu.memory_space<vmem>>, vector<1x13xf32>,
    %cst_7 = arith.constant 0.000000e+00 : f32
    %32 = vector.broadcast %cst_7 : f32 to vector<1x32xf32>
    %c0_8 = arith.constant 0 : index
    %c0_9 = arith.constant 0 : index
    %33 = vector.load %arg11[%c0_8, %c0_9] : memref<10x32xf32, #tpu.memory_space<vmem>>, vector<1x32xf32>
    tpu.vector_store %arg11[%c0_8, %c0_9], %32 {strides = array<i32>} : memref<10x32xf32, #tpu.memory_space<vmem>>, vector<1x32xf32>,
    %cst_10 = arith.constant 0.000000e+00 : f32
    %34 = vector.broadcast %cst_10 : f32 to vector<1x32xf32>
    %c9 = arith.constant 9 : index
    %c0_11 = arith.constant 0 : index
    %35 = vector.load %arg11[%c9, %c0_11] : memref<10x32xf32, #tpu.memory_space<vmem>>, vector<1x32xf32>
    tpu.vector_store %arg11[%c9, %c0_11], %34 {strides = array<i32>} : memref<10x32xf32, #tpu.memory_space<vmem>>, vector<1x32xf32>,
    %c0_12 = arith.constant 0 : index
    %c0_13 = arith.constant 0 : index
    %c0_14 = arith.constant 0 : index
    %36 = vector.load %arg0[%c0_12, %c0_13, %c0_14] : memref<2x16x13xf32, #tpu.memory_space<vmem>>, vector<1x16x13xf32>
    %37 = vector.shape_cast %36 : vector<1x16x13xf32> to vector<16x13xf32>
    %c1 = arith.constant 1 : index
    %c0_15 = arith.constant 0 : index
    %38 = vector.load %arg10[%c1, %c0_15] : memref<18x13xf32, #tpu.memory_space<vmem>>, vector<16x13xf32>
    tpu.vector_store %arg10[%c1, %c0_15], %37 {strides = array<i32>} : memref<18x13xf32, #tpu.memory_space<vmem>>, vector<16x13xf32>,
    %c0_16 = arith.constant 0 : index
    %c0_17 = arith.constant 0 : index
    %39 = vector.load %arg10[%c0_16, %c0_17] : memref<18x13xf32, #tpu.memory_space<vmem>>, vector<16x13xf32>
    %c0_18 = arith.constant 0 : index
    %c0_19 = arith.constant 0 : index
    %c0_20 = arith.constant 0 : index
    %40 = vector.load %arg1[%c0_18, %c0_19, %c0_20] : memref<3x13x32xf32, #tpu.memory_space<vmem>>, vector<1x13x32xf32>
    %41 = vector.shape_cast %40 : vector<1x13x32xf32> to vector<13x32xf32>
    %cst_21 = arith.constant dense<0.000000e+00> : vector<16x32xf32>
    %42 = tpu.matmul %39, %41, %cst_21 {dimension_numbers = #tpu.dot_dimension_numbers<[1], [0], [0], [1], [0, 0, 1, 1], [], []>} : vector<16x13xf32>, vector<13x32xf32>, vector<16x32xf32> -> vector<16x32xf32>
    %c1_22 = arith.constant 1 : index
    %c0_23 = arith.constant 0 : index
    %43 = vector.load %arg10[%c1_22, %c0_23] : memref<18x13xf32, #tpu.memory_space<vmem>>, vector<16x13xf32>
    %c1_24 = arith.constant 1 : index
    %c0_25 = arith.constant 0 : index
    %c0_26 = arith.constant 0 : index
    %44 = vector.load %arg1[%c1_24, %c0_25, %c0_26] : memref<3x13x32xf32, #tpu.memory_space<vmem>>, vector<1x13x32xf32>
    %45 = vector.shape_cast %44 : vector<1x13x32xf32> to vector<13x32xf32>
    %cst_27 = arith.constant dense<0.000000e+00> : vector<16x32xf32>
    %46 = tpu.matmul %43, %45, %cst_27 {dimension_numbers = #tpu.dot_dimension_numbers<[1], [0], [0], [1], [0, 0, 1, 1], [], []>} : vector<16x13xf32>, vector<13x32xf32>, vector<16x32xf32> -> vector<16x32xf32>
    %47 = arith.addf %42, %46 : vector<16x32xf32>
    %c2 = arith.constant 2 : index
    %c0_28 = arith.constant 0 : index
    %48 = vector.load %arg10[%c2, %c0_28] : memref<18x13xf32, #tpu.memory_space<vmem>>, vector<16x13xf32>
    %c2_29 = arith.constant 2 : index
    %c0_30 = arith.constant 0 : index
    %c0_31 = arith.constant 0 : index
    %49 = vector.load %arg1[%c2_29, %c0_30, %c0_31] : memref<3x13x32xf32, #tpu.memory_space<vmem>>, vector<1x13x32xf32>
    %50 = vector.shape_cast %49 : vector<1x13x32xf32> to vector<13x32xf32>
    %cst_32 = arith.constant dense<0.000000e+00> : vector<16x32xf32>
    %51 = tpu.matmul %48, %50, %cst_32 {dimension_numbers = #tpu.dot_dimension_numbers<[1], [0], [0], [1], [0, 0, 1, 1], [], []>} : vector<16x13xf32>, vector<13x32xf32>, vector<16x32xf32> -> vector<16x32xf32>
    %52 = arith.addf %47, %51 : vector<16x32xf32>
    %c0_33 = arith.constant 0 : index
    %c0_34 = arith.constant 0 : index
    %53 = vector.load %arg2[%c0_33, %c0_34] : memref<1x32xf32, #tpu.memory_space<vmem>>, vector<1x32xf32>
    %54 = vector.broadcast %53 : vector<1x32xf32> to vector<16x32xf32>
    %55 = arith.addf %52, %54 : vector<16x32xf32>
    %cst_35 = arith.constant 0.000000e+00 : f32
    %56 = vector.broadcast %cst_35 : f32 to vector<16x32xf32>
    %57 = arith.maximumf %55, %56 : vector<16x32xf32>
    %cst_36 = arith.constant dense<0.000000e+00> : vector<8x32xf32>
    %58 = tpu.matmul %6, %57, %cst_36 {dimension_numbers = #tpu.dot_dimension_numbers<[1], [0], [0], [1], [0, 0, 1, 1], [], []>} : vector<8x16xf32>, vector<16x32xf32>, vector<8x32xf32> -> vector<8x32xf32>
    %cst_37 = arith.constant dense<0.000000e+00> : vector<8x32xf32>
    %59 = tpu.matmul %13, %57, %cst_37 {dimension_numbers = #tpu.dot_dimension_numbers<[1], [0], [0], [1], [0, 0, 1, 1], [], []>} : vector<8x16xf32>, vector<16x32xf32>, vector<8x32xf32> -> vector<8x32xf32>
    %60 = arith.maximumf %58, %59 : vector<8x32xf32>
    %c1_38 = arith.constant 1 : index
    %c0_39 = arith.constant 0 : index
    %61 = vector.load %arg11[%c1_38, %c0_39] : memref<10x32xf32, #tpu.memory_space<vmem>>, vector<8x32xf32>
    tpu.vector_store %arg11[%c1_38, %c0_39], %60 {strides = array<i32>} : memref<10x32xf32, #tpu.memory_space<vmem>>, vector<8x32xf32>,
    %c0_40 = arith.constant 0 : index
    %c0_41 = arith.constant 0 : index
    %62 = vector.load %arg11[%c0_40, %c0_41] : memref<10x32xf32, #tpu.memory_space<vmem>>, vector<8x32xf32>
    %c0_42 = arith.constant 0 : index
    %c0_43 = arith.constant 0 : index
    %c0_44 = arith.constant 0 : index
    %63 = vector.load %arg3[%c0_42, %c0_43, %c0_44] : memref<3x32x64xf32, #tpu.memory_space<vmem>>, vector<1x32x64xf32>
    %64 = vector.shape_cast %63 : vector<1x32x64xf32> to vector<32x64xf32>
    %cst_45 = arith.constant dense<0.000000e+00> : vector<8x64xf32>
    %65 = tpu.matmul %62, %64, %cst_45 {dimension_numbers = #tpu.dot_dimension_numbers<[1], [0], [0], [1], [0, 0, 1, 1], [], []>} : vector<8x32xf32>, vector<32x64xf32>, vector<8x64xf32> -> vector<8x64xf32>
    %c1_46 = arith.constant 1 : index
    %c0_47 = arith.constant 0 : index
    %66 = vector.load %arg11[%c1_46, %c0_47] : memref<10x32xf32, #tpu.memory_space<vmem>>, vector<8x32xf32>
    %c1_48 = arith.constant 1 : index
    %c0_49 = arith.constant 0 : index
    %c0_50 = arith.constant 0 : index
    %67 = vector.load %arg3[%c1_48, %c0_49, %c0_50] : memref<3x32x64xf32, #tpu.memory_space<vmem>>, vector<1x32x64xf32>
    %68 = vector.shape_cast %67 : vector<1x32x64xf32> to vector<32x64xf32>
    %cst_51 = arith.constant dense<0.000000e+00> : vector<8x64xf32>
    %69 = tpu.matmul %66, %68, %cst_51 {dimension_numbers = #tpu.dot_dimension_numbers<[1], [0], [0], [1], [0, 0, 1, 1], [], []>} : vector<8x32xf32>, vector<32x64xf32>, vector<8x64xf32> -> vector<8x64xf32>
    %70 = arith.addf %65, %69 : vector<8x64xf32>
    %c2_52 = arith.constant 2 : index
    %c0_53 = arith.constant 0 : index
    %71 = vector.load %arg11[%c2_52, %c0_53] : memref<10x32xf32, #tpu.memory_space<vmem>>, vector<8x32xf32>
    %c2_54 = arith.constant 2 : index
    %c0_55 = arith.constant 0 : index
    %c0_56 = arith.constant 0 : index
    %72 = vector.load %arg3[%c2_54, %c0_55, %c0_56] : memref<3x32x64xf32, #tpu.memory_space<vmem>>, vector<1x32x64xf32>
    %73 = vector.shape_cast %72 : vector<1x32x64xf32> to vector<32x64xf32>
    %cst_57 = arith.constant dense<0.000000e+00> : vector<8x64xf32>
    %74 = tpu.matmul %71, %73, %cst_57 {dimension_numbers = #tpu.dot_dimension_numbers<[1], [0], [0], [1], [0, 0, 1, 1], [], []>} : vector<8x32xf32>, vector<32x64xf32>, vector<8x64xf32> -> vector<8x64xf32>
    %75 = arith.addf %70, %74 : vector<8x64xf32>
    %c0_58 = arith.constant 0 : index
    %c0_59 = arith.constant 0 : index
    %76 = vector.load %arg4[%c0_58, %c0_59] : memref<1x64xf32, #tpu.memory_space<vmem>>, vector<1x64xf32>
    %77 = vector.broadcast %76 : vector<1x64xf32> to vector<8x64xf32>
    %78 = arith.addf %75, %77 : vector<8x64xf32>
    %cst_60 = arith.constant 0.000000e+00 : f32
    %79 = vector.broadcast %cst_60 : f32 to vector<8x64xf32>
    %80 = arith.maximumf %78, %79 : vector<8x64xf32>
    %cst_61 = arith.constant dense<0.000000e+00> : vector<4x64xf32>
    %81 = tpu.matmul %20, %80, %cst_61 {dimension_numbers = #tpu.dot_dimension_numbers<[1], [0], [0], [1], [0, 0, 1, 1], [], []>} : vector<4x8xf32>, vector<8x64xf32>, vector<4x64xf32> -> vector<4x64xf32>
    %cst_62 = arith.constant dense<0.000000e+00> : vector<4x64xf32>
    %82 = tpu.matmul %27, %80, %cst_62 {dimension_numbers = #tpu.dot_dimension_numbers<[1], [0], [0], [1], [0, 0, 1, 1], [], []>} : vector<4x8xf32>, vector<8x64xf32>, vector<4x64xf32> -> vector<4x64xf32>
    %83 = arith.maximumf %81, %82 : vector<4x64xf32>
    %84 = vector.extract_strided_slice %83 {offsets = [0, 0], sizes = [1, 64], strides = [1, 1]} : vector<4x64xf32> to vector<1x64xf32>
    %c0_63 = arith.constant 0 : index
    %c0_64 = arith.constant 0 : index
    %85 = vector.load %arg5[%c0_63, %c0_64] : memref<256x64xf32, #tpu.memory_space<vmem>>, vector<64x64xf32>
    %cst_65 = arith.constant dense<0.000000e+00> : vector<1x64xf32>
    %86 = tpu.matmul %84, %85, %cst_65 {dimension_numbers = #tpu.dot_dimension_numbers<[1], [0], [0], [1], [0, 0, 1, 1], [], []>} : vector<1x64xf32>, vector<64x64xf32>, vector<1x64xf32> -> vector<1x64xf32>
    %87 = vector.extract_strided_slice %83 {offsets = [1, 0], sizes = [1, 64], strides = [1, 1]} : vector<4x64xf32> to vector<1x64xf32>
    %c64 = arith.constant 64 : index
    %c0_66 = arith.constant 0 : index
    %88 = vector.load %arg5[%c64, %c0_66] : memref<256x64xf32, #tpu.memory_space<vmem>>, vector<64x64xf32>
    %cst_67 = arith.constant dense<0.000000e+00> : vector<1x64xf32>
    %89 = tpu.matmul %87, %88, %cst_67 {dimension_numbers = #tpu.dot_dimension_numbers<[1], [0], [0], [1], [0, 0, 1, 1], [], []>} : vector<1x64xf32>, vector<64x64xf32>, vector<1x64xf32> -> vector<1x64xf32>
    %90 = arith.addf %86, %89 : vector<1x64xf32>
    %91 = vector.extract_strided_slice %83 {offsets = [2, 0], sizes = [1, 64], strides = [1, 1]} : vector<4x64xf32> to vector<1x64xf32>
    %c128 = arith.constant 128 : index
    %c0_68 = arith.constant 0 : index
    %92 = vector.load %arg5[%c128, %c0_68] : memref<256x64xf32, #tpu.memory_space<vmem>>, vector<64x64xf32>
    %cst_69 = arith.constant dense<0.000000e+00> : vector<1x64xf32>
    %93 = tpu.matmul %91, %92, %cst_69 {dimension_numbers = #tpu.dot_dimension_numbers<[1], [0], [0], [1], [0, 0, 1, 1], [], []>} : vector<1x64xf32>, vector<64x64xf32>, vector<1x64xf32> -> vector<1x64xf32>
    %94 = arith.addf %90, %93 : vector<1x64xf32>
    %95 = vector.extract_strided_slice %83 {offsets = [3, 0], sizes = [1, 64], strides = [1, 1]} : vector<4x64xf32> to vector<1x64xf32>
    %c192 = arith.constant 192 : index
    %c0_70 = arith.constant 0 : index
    %96 = vector.load %arg5[%c192, %c0_70] : memref<256x64xf32, #tpu.memory_space<vmem>>, vector<64x64xf32>
    %cst_71 = arith.constant dense<0.000000e+00> : vector<1x64xf32>
    %97 = tpu.matmul %95, %96, %cst_71 {dimension_numbers = #tpu.dot_dimension_numbers<[1], [0], [0], [1], [0, 0, 1, 1], [], []>} : vector<1x64xf32>, vector<64x64xf32>, vector<1x64xf32> -> vector<1x64xf32>
    %98 = arith.addf %94, %97 : vector<1x64xf32>
    %c0_72 = arith.constant 0 : index
    %c0_73 = arith.constant 0 : index
    %99 = vector.load %arg12[%c0_72, %c0_73] : memref<2x64xf32, #tpu.memory_space<vmem>>, vector<1x64xf32>
    tpu.vector_store %arg12[%c0_72, %c0_73], %98 {strides = array<i32>} : memref<2x64xf32, #tpu.memory_space<vmem>>, vector<1x64xf32>,
    %c1_74 = arith.constant 1 : index
    %c0_75 = arith.constant 0 : index
    %c0_76 = arith.constant 0 : index
    %100 = vector.load %arg0[%c1_74, %c0_75, %c0_76] : memref<2x16x13xf32, #tpu.memory_space<vmem>>, vector<1x16x13xf32>
    %101 = vector.shape_cast %100 : vector<1x16x13xf32> to vector<16x13xf32>
    %c1_77 = arith.constant 1 : index
    %c0_78 = arith.constant 0 : index
    %102 = vector.load %arg10[%c1_77, %c0_78] : memref<18x13xf32, #tpu.memory_space<vmem>>, vector<16x13xf32>
    tpu.vector_store %arg10[%c1_77, %c0_78], %101 {strides = array<i32>} : memref<18x13xf32, #tpu.memory_space<vmem>>, vector<16x13xf32>,
    %c0_79 = arith.constant 0 : index
    %c0_80 = arith.constant 0 : index
    %103 = vector.load %arg10[%c0_79, %c0_80] : memref<18x13xf32, #tpu.memory_space<vmem>>, vector<16x13xf32>
    %c0_81 = arith.constant 0 : index
    %c0_82 = arith.constant 0 : index
    %c0_83 = arith.constant 0 : index
    %104 = vector.load %arg1[%c0_81, %c0_82, %c0_83] : memref<3x13x32xf32, #tpu.memory_space<vmem>>, vector<1x13x32xf32>
    %105 = vector.shape_cast %104 : vector<1x13x32xf32> to vector<13x32xf32>
    %cst_84 = arith.constant dense<0.000000e+00> : vector<16x32xf32>
    %106 = tpu.matmul %103, %105, %cst_84 {dimension_numbers = #tpu.dot_dimension_numbers<[1], [0], [0], [1], [0, 0, 1, 1], [], []>} : vector<16x13xf32>, vector<13x32xf32>, vector<16x32xf32> -> vector<16x32xf32>
    %c1_85 = arith.constant 1 : index
    %c0_86 = arith.constant 0 : index
    %107 = vector.load %arg10[%c1_85, %c0_86] : memref<18x13xf32, #tpu.memory_space<vmem>>, vector<16x13xf32>
    %c1_87 = arith.constant 1 : index
    %c0_88 = arith.constant 0 : index
    %c0_89 = arith.constant 0 : index
    %108 = vector.load %arg1[%c1_87, %c0_88, %c0_89] : memref<3x13x32xf32, #tpu.memory_space<vmem>>, vector<1x13x32xf32>
    %109 = vector.shape_cast %108 : vector<1x13x32xf32> to vector<13x32xf32>
    %cst_90 = arith.constant dense<0.000000e+00> : vector<16x32xf32>
    %110 = tpu.matmul %107, %109, %cst_90 {dimension_numbers = #tpu.dot_dimension_numbers<[1], [0], [0], [1], [0, 0, 1, 1], [], []>} : vector<16x13xf32>, vector<13x32xf32>, vector<16x32xf32> -> vector<16x32xf32>
    %111 = arith.addf %106, %110 : vector<16x32xf32>
    %c2_91 = arith.constant 2 : index
    %c0_92 = arith.constant 0 : index
    %112 = vector.load %arg10[%c2_91, %c0_92] : memref<18x13xf32, #tpu.memory_space<vmem>>, vector<16x13xf32>
    %c2_93 = arith.constant 2 : index
    %c0_94 = arith.constant 0 : index
    %c0_95 = arith.constant 0 : index
    %113 = vector.load %arg1[%c2_93, %c0_94, %c0_95] : memref<3x13x32xf32, #tpu.memory_space<vmem>>, vector<1x13x32xf32>
    %114 = vector.shape_cast %113 : vector<1x13x32xf32> to vector<13x32xf32>
    %cst_96 = arith.constant dense<0.000000e+00> : vector<16x32xf32>
    %115 = tpu.matmul %112, %114, %cst_96 {dimension_numbers = #tpu.dot_dimension_numbers<[1], [0], [0], [1], [0, 0, 1, 1], [], []>} : vector<16x13xf32>, vector<13x32xf32>, vector<16x32xf32> -> vector<16x32xf32>
    %116 = arith.addf %111, %115 : vector<16x32xf32>
    %c0_97 = arith.constant 0 : index
    %c0_98 = arith.constant 0 : index
    %117 = vector.load %arg2[%c0_97, %c0_98] : memref<1x32xf32, #tpu.memory_space<vmem>>, vector<1x32xf32>
    %118 = vector.broadcast %117 : vector<1x32xf32> to vector<16x32xf32>
    %119 = arith.addf %116, %118 : vector<16x32xf32>
    %cst_99 = arith.constant 0.000000e+00 : f32
    %120 = vector.broadcast %cst_99 : f32 to vector<16x32xf32>
    %121 = arith.maximumf %119, %120 : vector<16x32xf32>
    %cst_100 = arith.constant dense<0.000000e+00> : vector<8x32xf32>
    %122 = tpu.matmul %6, %121, %cst_100 {dimension_numbers = #tpu.dot_dimension_numbers<[1], [0], [0], [1], [0, 0, 1, 1], [], []>} : vector<8x16xf32>, vector<16x32xf32>, vector<8x32xf32> -> vector<8x32xf32>
    %cst_101 = arith.constant dense<0.000000e+00> : vector<8x32xf32>
    %123 = tpu.matmul %13, %121, %cst_101 {dimension_numbers = #tpu.dot_dimension_numbers<[1], [0], [0], [1], [0, 0, 1, 1], [], []>} : vector<8x16xf32>, vector<16x32xf32>, vector<8x32xf32> -> vector<8x32xf32>
    %124 = arith.maximumf %122, %123 : vector<8x32xf32>
    %c1_102 = arith.constant 1 : index
    %c0_103 = arith.constant 0 : index
    %125 = vector.load %arg11[%c1_102, %c0_103] : memref<10x32xf32, #tpu.memory_space<vmem>>, vector<8x32xf32>
    tpu.vector_store %arg11[%c1_102, %c0_103], %124 {strides = array<i32>} : memref<10x32xf32, #tpu.memory_space<vmem>>, vector<8x32xf32>,
    %c0_104 = arith.constant 0 : index
    %c0_105 = arith.constant 0 : index
    %126 = vector.load %arg11[%c0_104, %c0_105] : memref<10x32xf32, #tpu.memory_space<vmem>>, vector<8x32xf32>
    %c0_106 = arith.constant 0 : index
    %c0_107 = arith.constant 0 : index
    %c0_108 = arith.constant 0 : index
    %127 = vector.load %arg3[%c0_106, %c0_107, %c0_108] : memref<3x32x64xf32, #tpu.memory_space<vmem>>, vector<1x32x64xf32>
    %128 = vector.shape_cast %127 : vector<1x32x64xf32> to vector<32x64xf32>
    %cst_109 = arith.constant dense<0.000000e+00> : vector<8x64xf32>
    %129 = tpu.matmul %126, %128, %cst_109 {dimension_numbers = #tpu.dot_dimension_numbers<[1], [0], [0], [1], [0, 0, 1, 1], [], []>} : vector<8x32xf32>, vector<32x64xf32>, vector<8x64xf32> -> vector<8x64xf32>
    %c1_110 = arith.constant 1 : index
    %c0_111 = arith.constant 0 : index
    %130 = vector.load %arg11[%c1_110, %c0_111] : memref<10x32xf32, #tpu.memory_space<vmem>>, vector<8x32xf32>
    %c1_112 = arith.constant 1 : index
    %c0_113 = arith.constant 0 : index
    %c0_114 = arith.constant 0 : index
    %131 = vector.load %arg3[%c1_112, %c0_113, %c0_114] : memref<3x32x64xf32, #tpu.memory_space<vmem>>, vector<1x32x64xf32>
    %132 = vector.shape_cast %131 : vector<1x32x64xf32> to vector<32x64xf32>
    %cst_115 = arith.constant dense<0.000000e+00> : vector<8x64xf32>
    %133 = tpu.matmul %130, %132, %cst_115 {dimension_numbers = #tpu.dot_dimension_numbers<[1], [0], [0], [1], [0, 0, 1, 1], [], []>} : vector<8x32xf32>, vector<32x64xf32>, vector<8x64xf32> -> vector<8x64xf32>
    %134 = arith.addf %129, %133 : vector<8x64xf32>
    %c2_116 = arith.constant 2 : index
    %c0_117 = arith.constant 0 : index
    %135 = vector.load %arg11[%c2_116, %c0_117] : memref<10x32xf32, #tpu.memory_space<vmem>>, vector<8x32xf32>
    %c2_118 = arith.constant 2 : index
    %c0_119 = arith.constant 0 : index
    %c0_120 = arith.constant 0 : index
    %136 = vector.load %arg3[%c2_118, %c0_119, %c0_120] : memref<3x32x64xf32, #tpu.memory_space<vmem>>, vector<1x32x64xf32>
    %137 = vector.shape_cast %136 : vector<1x32x64xf32> to vector<32x64xf32>
    %cst_121 = arith.constant dense<0.000000e+00> : vector<8x64xf32>
    %138 = tpu.matmul %135, %137, %cst_121 {dimension_numbers = #tpu.dot_dimension_numbers<[1], [0], [0], [1], [0, 0, 1, 1], [], []>} : vector<8x32xf32>, vector<32x64xf32>, vector<8x64xf32> -> vector<8x64xf32>
    %139 = arith.addf %134, %138 : vector<8x64xf32>
    %c0_122 = arith.constant 0 : index
    %c0_123 = arith.constant 0 : index
    %140 = vector.load %arg4[%c0_122, %c0_123] : memref<1x64xf32, #tpu.memory_space<vmem>>, vector<1x64xf32>
    %141 = vector.broadcast %140 : vector<1x64xf32> to vector<8x64xf32>
    %142 = arith.addf %139, %141 : vector<8x64xf32>
    %cst_124 = arith.constant 0.000000e+00 : f32
    %143 = vector.broadcast %cst_124 : f32 to vector<8x64xf32>
    %144 = arith.maximumf %142, %143 : vector<8x64xf32>
    %cst_125 = arith.constant dense<0.000000e+00> : vector<4x64xf32>
    %145 = tpu.matmul %20, %144, %cst_125 {dimension_numbers = #tpu.dot_dimension_numbers<[1], [0], [0], [1], [0, 0, 1, 1], [], []>} : vector<4x8xf32>, vector<8x64xf32>, vector<4x64xf32> -> vector<4x64xf32>
    %cst_126 = arith.constant dense<0.000000e+00> : vector<4x64xf32>
    %146 = tpu.matmul %27, %144, %cst_126 {dimension_numbers = #tpu.dot_dimension_numbers<[1], [0], [0], [1], [0, 0, 1, 1], [], []>} : vector<4x8xf32>, vector<8x64xf32>, vector<4x64xf32> -> vector<4x64xf32>
    %147 = arith.maximumf %145, %146 : vector<4x64xf32>
    %148 = vector.extract_strided_slice %147 {offsets = [0, 0], sizes = [1, 64], strides = [1, 1]} : vector<4x64xf32> to vector<1x64xf32>
    %c0_127 = arith.constant 0 : index
    %c0_128 = arith.constant 0 : index
    %149 = vector.load %arg5[%c0_127, %c0_128] : memref<256x64xf32, #tpu.memory_space<vmem>>, vector<64x64xf32>
    %cst_129 = arith.constant dense<0.000000e+00> : vector<1x64xf32>
    %150 = tpu.matmul %148, %149, %cst_129 {dimension_numbers = #tpu.dot_dimension_numbers<[1], [0], [0], [1], [0, 0, 1, 1], [], []>} : vector<1x64xf32>, vector<64x64xf32>, vector<1x64xf32> -> vector<1x64xf32>
    %151 = vector.extract_strided_slice %147 {offsets = [1, 0], sizes = [1, 64], strides = [1, 1]} : vector<4x64xf32> to vector<1x64xf32>
    %c64_130 = arith.constant 64 : index
    %c0_131 = arith.constant 0 : index
    %152 = vector.load %arg5[%c64_130, %c0_131] : memref<256x64xf32, #tpu.memory_space<vmem>>, vector<64x64xf32>
    %cst_132 = arith.constant dense<0.000000e+00> : vector<1x64xf32>
    %153 = tpu.matmul %151, %152, %cst_132 {dimension_numbers = #tpu.dot_dimension_numbers<[1], [0], [0], [1], [0, 0, 1, 1], [], []>} : vector<1x64xf32>, vector<64x64xf32>, vector<1x64xf32> -> vector<1x64xf32>
    %154 = arith.addf %150, %153 : vector<1x64xf32>
    %155 = vector.extract_strided_slice %147 {offsets = [2, 0], sizes = [1, 64], strides = [1, 1]} : vector<4x64xf32> to vector<1x64xf32>
    %c128_133 = arith.constant 128 : index
    %c0_134 = arith.constant 0 : index
    %156 = vector.load %arg5[%c128_133, %c0_134] : memref<256x64xf32, #tpu.memory_space<vmem>>, vector<64x64xf32>
    %cst_135 = arith.constant dense<0.000000e+00> : vector<1x64xf32>
    %157 = tpu.matmul %155, %156, %cst_135 {dimension_numbers = #tpu.dot_dimension_numbers<[1], [0], [0], [1], [0, 0, 1, 1], [], []>} : vector<1x64xf32>, vector<64x64xf32>, vector<1x64xf32> -> vector<1x64xf32>
    %158 = arith.addf %154, %157 : vector<1x64xf32>
    %159 = vector.extract_strided_slice %147 {offsets = [3, 0], sizes = [1, 64], strides = [1, 1]} : vector<4x64xf32> to vector<1x64xf32>
    %c192_136 = arith.constant 192 : index
    %c0_137 = arith.constant 0 : index
    %160 = vector.load %arg5[%c192_136, %c0_137] : memref<256x64xf32, #tpu.memory_space<vmem>>, vector<64x64xf32>
    %cst_138 = arith.constant dense<0.000000e+00> : vector<1x64xf32>
    %161 = tpu.matmul %159, %160, %cst_138 {dimension_numbers = #tpu.dot_dimension_numbers<[1], [0], [0], [1], [0, 0, 1, 1], [], []>} : vector<1x64xf32>, vector<64x64xf32>, vector<1x64xf32> -> vector<1x64xf32>
    %162 = arith.addf %158, %161 : vector<1x64xf32>
    %c1_139 = arith.constant 1 : index
    %c0_140 = arith.constant 0 : index
    %163 = vector.load %arg12[%c1_139, %c0_140] : memref<2x64xf32, #tpu.memory_space<vmem>>, vector<1x64xf32>
    tpu.vector_store %arg12[%c1_139, %c0_140], %162 {strides = array<i32>} : memref<2x64xf32, #tpu.memory_space<vmem>>, vector<1x64xf32>,
    %c0_141 = arith.constant 0 : index
    %c0_142 = arith.constant 0 : index
    %164 = vector.load %arg12[%c0_141, %c0_142] : memref<2x64xf32, #tpu.memory_space<vmem>>, vector<2x64xf32>
    %c0_143 = arith.constant 0 : index
    %c0_144 = arith.constant 0 : index
    %165 = vector.load %arg6[%c0_143, %c0_144] : memref<1x64xf32, #tpu.memory_space<vmem>>, vector<1x64xf32>
    %166 = vector.broadcast %165 : vector<1x64xf32> to vector<2x64xf32>
    %167 = arith.addf %164, %166 : vector<2x64xf32>
    %cst_145 = arith.constant 0.000000e+00 : f32
    %168 = vector.broadcast %cst_145 : f32 to vector<2x64xf32>
    %169 = arith.maximumf %167, %168 : vector<2x64xf32>
    %c0_146 = arith.constant 0 : index
    %c0_147 = arith.constant 0 : index
    %170 = vector.load %arg7[%c0_146, %c0_147] : memref<64x8xf32, #tpu.memory_space<vmem>>, vector<64x8xf32>
    %cst_148 = arith.constant dense<0.000000e+00> : vector<2x8xf32>
    %171 = tpu.matmul %169, %170, %cst_148 {dimension_numbers = #tpu.dot_dimension_numbers<[1], [0], [0], [1], [0, 0, 1, 1], [], []>} : vector<2x64xf32>, vector<64x8xf32>, vector<2x8xf32> -> vector<2x8xf32>
    %c0_149 = arith.constant 0 : index
    %c0_150 = arith.constant 0 : index
    %172 = vector.load %arg8[%c0_149, %c0_150] : memref<1x8xf32, #tpu.memory_space<vmem>>, vector<1x8xf32>
    %173 = vector.broadcast %172 : vector<1x8xf32> to vector<2x8xf32>
    %174 = arith.addf %171, %173 : vector<2x8xf32>
    %c0_151 = arith.constant 0 : index
    %c0_152 = arith.constant 0 : index
    %175 = vector.load %arg9[%c0_151, %c0_152] : memref<2x8xf32, #tpu.memory_space<vmem>>, vector<2x8xf32>
    tpu.vector_store %arg9[%c0_151, %c0_152], %174 {strides = array<i32>} : memref<2x8xf32, #tpu.memory_space<vmem>>, vector<2x8xf32>,
    return
  }
}

</mosaic_0001>

<llo_original>
// kernel: tpu_custom_call.1
$region0: #{tpu_custom_call.1}
  #allocation0 [shape = 'u32[]', space=smem, size = 0x4, offset = 0x4, fixed_abs, tag = 'smem constant byte address 0x4 - core index']
  #allocation1 [shape = 'u32[144,128]{1,0:T(1,128)}', space=vmem, size = 0x12000, scoped, tag = 'internal scratch']
  #allocation2 [shape = 'f32[18,13]{1,0:T(8,128)}', space=vmem, size = 0x3000, scoped, tag = 'scratch operand']
  #allocation3 [shape = 'f32[10,32]{1,0:T(8,128)}', space=vmem, size = 0x2000, scoped, tag = 'scratch operand']
  #allocation4 [shape = 'f32[2,64]{1,0:T(2,128)}', space=vmem, size = 0x400, scoped, tag = 'scratch operand']
  %s0 = inlined_call_operand.vmem [shape: f32[2,16,13], index: 0, kind: input, shape index: {}]
  %s1 = inlined_call_operand.vmem [shape: f32[3,13,32], index: 1, kind: input, shape index: {}]
  %s2 = inlined_call_operand.vmem [shape: f32[1,32], index: 2, kind: input, shape index: {}]
  %s3 = inlined_call_operand.vmem [shape: f32[3,32,64], index: 3, kind: input, shape index: {}]
  %s4 = inlined_call_operand.vmem [shape: f32[1,64], index: 4, kind: input, shape index: {}]
  %s5 = inlined_call_operand.vmem [shape: f32[256,64], index: 5, kind: input, shape index: {}]
  %s6 = inlined_call_operand.vmem [shape: f32[1,64], index: 6, kind: input, shape index: {}]
  %s7 = inlined_call_operand.vmem [shape: f32[64,8], index: 7, kind: input, shape index: {}]
  %s8 = inlined_call_operand.vmem [shape: f32[1,8], index: 8, kind: input, shape index: {}]
  %s9 = inlined_call_operand.hbm [shape: f32[2,8], index: 9, kind: output, shape index: {}]
  %s10 = sld [smem:[#allocation0]]
  $region46: #{tpu_custom_call.1} parent=0
    _
  %s12 = ssub.s32 1, %s10
  %s13 = scalar_select 0, %s12, %s10
  $region1: #{tpu_custom_call.1} parent=0
    #allocation5 [shape = 'u8[1024]{0}', space=vmem, size = 0x400, scoped, tag = 'output window, operand 0, single buffered']
    #allocation6 [shape = 's32[1]{0}', space=sflag, size = 0x4, scoped, tag = 'scoped memory for tpu_custom_call.1']
    %14 = vsyncpa [#allocation6], 0
    // Predicated region
    $region2: #{tpu_custom_call.1} parent=1 // pred_check
      _
    $region3: #{tpu_custom_call.1} parent=1 // pred_check_branch
      %16 = sbr.rel (0) target = $region5
    $region4: #{tpu_custom_call.1} parent=1 // pred_region
      _
    $region5: #{tpu_custom_call.1} parent=1 // pred_fallthru
      _
    // Predicated region
    $region6: #{tpu_custom_call.1} parent=1 // pred_check
      _
    $region7: #{tpu_custom_call.1} parent=1 // pred_check_branch
      %18 = sbr.rel (0) target = $region9
    $region8: #{tpu_custom_call.1} parent=1 // pred_region
      _
    $region9: #{tpu_custom_call.1} parent=1 // pred_fallthru
      _
    // Predicated region
    $region10: #{tpu_custom_call.1} parent=1 // pred_check
      _
    $region11: #{tpu_custom_call.1} parent=1 // pred_check_branch
      %20 = sbr.rel (0) target = $region13
    $region12: #{tpu_custom_call.1} parent=1 // pred_region
      _
    $region13: #{tpu_custom_call.1} parent=1 // pred_fallthru
      _
    // Predicated region
    $region14: #{tpu_custom_call.1} parent=1 // pred_check
      _
    $region15: #{tpu_custom_call.1} parent=1 // pred_check_branch
      %22 = sbr.rel (0) target = $region17
    $region16: #{tpu_custom_call.1} parent=1 // pred_region
      _
    $region17: #{tpu_custom_call.1} parent=1 // pred_fallthru
      _
    // Predicated region
    $region18: #{tpu_custom_call.1} parent=1 // pred_check
      _
    $region19: #{tpu_custom_call.1} parent=1 // pred_check_branch
      %24 = sbr.rel (0) target = $region21
    $region20: #{tpu_custom_call.1} parent=1 // pred_region
      _
    $region21: #{tpu_custom_call.1} parent=1 // pred_fallthru
      _
    // Predicated region
    $region22: #{tpu_custom_call.1} parent=1 // pred_check
      _
    $region23: #{tpu_custom_call.1} parent=1 // pred_check_branch
      %26 = sbr.rel (0) target = $region25
    $region24: #{tpu_custom_call.1} parent=1 // pred_region
      _
    $region25: #{tpu_custom_call.1} parent=1 // pred_fallthru
      _
    // Predicated region
    $region26: #{tpu_custom_call.1} parent=1 // pred_check
      _
    $region27: #{tpu_custom_call.1} parent=1 // pred_check_branch
      %28 = sbr.rel (0) target = $region29
    $region28: #{tpu_custom_call.1} parent=1 // pred_region
      _
    $region29: #{tpu_custom_call.1} parent=1 // pred_fallthru
      _
    // Predicated region
    $region30: #{tpu_custom_call.1} parent=1 // pred_check
      _
    $region31: #{tpu_custom_call.1} parent=1 // pred_check_branch
      %30 = sbr.rel (0) target = $region33
    $region32: #{tpu_custom_call.1} parent=1 // pred_region
      _
    $region33: #{tpu_custom_call.1} parent=1 // pred_fallthru
      _
    // Predicated region
    $region34: #{tpu_custom_call.1} parent=1 // pred_check
      _
    $region35: #{tpu_custom_call.1} parent=1 // pred_check_branch
      %32 = sbr.rel (0) target = $region37
    $region36: #{tpu_custom_call.1} parent=1 // pred_region
      _
    $region37: #{tpu_custom_call.1} parent=1 // pred_fallthru
      _
    %v33 = vlaneseq
    %v34 = vshrl.u32 %v33, 7
    %v35 = vlaneseq
    %v36 = vand.u32 %v35, 127
    %v37 = vmul.u32 %v34, 2
    %vm38 = vcmp.eq.s32.totalorder %v36, %v37
    %v39 = vsel %vm38, 1, 0
    %v40 = vcvt.s32.f32 %v39
    %v41 = vadd.s32 %v37, 1
    %vm42 = vcmp.eq.s32.totalorder %v36, %v41
    %v43 = vsel %vm42, 1, 0
    %v44 = vcvt.s32.f32 %v43
    %vm45 = vcmask 98304
    %46 = vst.msk [vmem:[#allocation2] sm:$0x1] %vm45, 0.0
    %47 = vst.msk [vmem:[#allocation2 + $0x11] sm:$0x1] %vm45, 0.0
    %vm48 = vcmask 253952
    %49 = vst.msk [vmem:[#allocation3] sm:$0x1] %vm48, 0.0
    %50 = vst.msk [vmem:[#allocation3 + $0x9] sm:$0x1] %vm48, 0.0
    %v51 = vld [vmem:[%s0] sm:$0xff]
    %v52 = vld [vmem:[%s0 + $0x8] sm:$0xff]
    %vm53 = vcmask 105472
    %54 = vst.msk [vmem:[#allocation2 + $0x1] sm:$0xff] %vm53, %v51
    %55 = vst.msk [vmem:[#allocation2 + $0x9] sm:$0xff] %vm53, %v52
    %v56 = vld [vmem:[#allocation2] sm:$0xff]
    %v57 = vld [vmem:[#allocation2 + $0x8] sm:$0xff]
    %v58 = vld [vmem:[%s1] sm:$0xff]
    %v59 = vld [vmem:[%s1 + $0x8] sm:$0x1f]
    %v60 = vld [vmem:[#allocation2 + $0x1] sm:$0xff]
    %v61 = vld [vmem:[#allocation2 + $0x9] sm:$0xff]
    %s62 = scalar_lea.vmem %s1, 16
    %v63 = vld [vmem:[%s62] sm:$0xff]
    %v64 = vld [vmem:[%s62 + $0x8] sm:$0x1f]
    %v66 = vsel %vm53, %v60, 0
    %v69 = vsel %vm53, %v61, 0
    %vm71 = vcmask 1044480
    %v73 = vsel %vm71, %v64, 0
    %75 = vmatprep.subr.mxu0 0.0
    %76 = vmatpush1.msra.mxu0 %v63
    %77 = vmatprep.subr.mxu0 0.0
    %78 = vmatpush1.msra.mxu0 %v73
    %79 = vmatprep.subr.mxu0 0.0
    %80 = vmatpush1.msra.mxu0 0.0
    %81 = vmatprep.subr.mxu0 0.0
    %82 = vmatpush1.msra.mxu0 0.0
    %83 = vmatprep.subr.mxu0 0.0
    %84 = vmatpush1.msra.mxu0 0.0
    %85 = vmatprep.subr.mxu0 0.0
    %86 = vmatpush1.msra.mxu0 0.0
    %87 = vmatprep.subr.mxu0 0.0
    %88 = vmatpush1.msra.mxu0 0.0
    %89 = vmatprep.subr.mxu0 0.0
    %90 = vmatpush1.msra.mxu0 0.0
    %91 = vmatprep.subr.mxu0 0.0
    %92 = vmatpush1.msra.mxu0 0.0
    %93 = vmatprep.subr.mxu0 0.0
    %94 = vmatpush1.msra.mxu0 0.0
    %95 = vmatprep.subr.mxu0 0.0
    %96 = vmatpush1.msra.mxu0 0.0
    %97 = vmatprep.subr.mxu0 0.0
    %98 = vmatpush1.msra.mxu0 0.0
    %99 = vmatprep.subr.mxu0 0.0
    %100 = vmatpush1.msra.mxu0 0.0
    %101 = vmatprep.subr.mxu0 0.0
    %102 = vmatpush1.msra.mxu0 0.0
    %103 = vmatprep.subr.mxu0 0.0
    %104 = vmatpush1.msra.mxu0 0.0
    %105 = vmatprep.subr.mxu0 0.0
    %106 = vmatpush1.msra.mxu0 0.0
    %107 = vmatprep.subr.mxu0 0.0
    %108 = vmatpush1.msra.mxu0 0.0
    %109 = vmatprep.subr.mxu0 0.0
    %110 = vmatpush1.msra.mxu0 0.0
    %111 = vmatprep.subr.mxu0 0.0
    %112 = vmatpush1.msra.mxu0 0.0
    %113 = vmatprep.subr.mxu0 0.0
    %114 = vmatpush1.msra.mxu0 0.0
    %115 = vmatprep.subr.mxu0 0.0
    %116 = vmatpush1.msra.mxu0 0.0
    %117 = vmatprep.subr.mxu0 0.0
    %118 = vmatpush1.msra.mxu0 0.0
    %119 = vmatprep.subr.mxu0 0.0
    %120 = vmatpush1.msra.mxu0 0.0
    %121 = vmatprep.subr.mxu0 0.0
    %122 = vmatpush1.msra.mxu0 0.0
    %123 = vmatprep.subr.mxu0 0.0
    %124 = vmatpush1.msra.mxu0 0.0
    %125 = vmatprep.subr.mxu0 0.0
    %126 = vmatpush1.msra.mxu0 0.0
    %127 = vmatprep.subr.mxu0 0.0
    %128 = vmatpush1.msra.mxu0 0.0
    %129 = vmatprep.subr.mxu0 0.0
    %130 = vmatpush1.msra.mxu0 0.0
    %131 = vmatprep.subr.mxu0 0.0
    %132 = vmatpush1.msra.mxu0 0.0
    %133 = vmatprep.subr.mxu0 0.0
    %134 = vmatpush1.msra.mxu0 0.0
    %135 = vmatprep.subr.mxu0 0.0
    %136 = vmatpush1.msra.mxu0 0.0
    %137 = vmatprep.subr.mxu0 0.0
    %138 = vmatpush1.msra.mxu0 0.0
    %139 = vmatprep.mubr.f32.mxu0 0.0
    %140 = vmatmul.mubr.f32.gmra.mrb[0].mxu0 %v66
    %v141 = vpop.f32.mrb[0].mxu0
    %v142 = vadd.f32 0.0, %v141
    %v143 = vpop.f32.mrb[0].mxu0
    %144 = vmatprep.mubr.f32.mxu0 0.0
    %145 = vmatmul.mubr.f32.gmra.mrb[0].mxu0 %v69
    %v146 = vpop.f32.mrb[0].mxu0
    %v147 = vadd.f32 0.0, %v146
    %v148 = vpop.f32.mrb[0].mxu0
    %149 = vdwg.mxu0
    %v151 = vsel %vm53, %v56, 0
    %v154 = vsel %vm53, %v57, 0
    %v157 = vsel %vm71, %v59, 0
    %159 = vmatprep.subr.mxu0 0.0
    %160 = vmatpush1.msra.mxu0 %v58
    %161 = vmatprep.subr.mxu0 0.0
    %162 = vmatpush1.msra.mxu0 %v157
    %163 = vmatprep.subr.mxu0 0.0
    %164 = vmatpush1.msra.mxu0 0.0
    %165 = vmatprep.subr.mxu0 0.0
    %166 = vmatpush1.msra.mxu0 0.0
    %167 = vmatprep.subr.mxu0 0.0
    %168 = vmatpush1.msra.mxu0 0.0
    %169 = vmatprep.subr.mxu0 0.0
    %170 = vmatpush1.msra.mxu0 0.0
    %171 = vmatprep.subr.mxu0 0.0
    %172 = vmatpush1.msra.mxu0 0.0
    %173 = vmatprep.subr.mxu0 0.0
    %174 = vmatpush1.msra.mxu0 0.0
    %175 = vmatprep.subr.mxu0 0.0
    %176 = vmatpush1.msra.mxu0 0.0
    %177 = vmatprep.subr.mxu0 0.0
    %178 = vmatpush1.msra.mxu0 0.0
    %179 = vmatprep.subr.mxu0 0.0
    %180 = vmatpush1.msra.mxu0 0.0
    %181 = vmatprep.subr.mxu0 0.0
    %182 = vmatpush1.msra.mxu0 0.0
    %183 = vmatprep.subr.mxu0 0.0
    %184 = vmatpush1.msra.mxu0 0.0
    %185 = vmatprep.subr.mxu0 0.0
    %186 = vmatpush1.msra.mxu0 0.0
    %187 = vmatprep.subr.mxu0 0.0
    %188 = vmatpush1.msra.mxu0 0.0
    %189 = vmatprep.subr.mxu0 0.0
    %190 = vmatpush1.msra.mxu0 0.0
    %191 = vmatprep.subr.mxu0 0.0
    %192 = vmatpush1.msra.mxu0 0.0
    %193 = vmatprep.subr.mxu0 0.0
    %194 = vmatpush1.msra.mxu0 0.0
    %195 = vmatprep.subr.mxu0 0.0
    %196 = vmatpush1.msra.mxu0 0.0
    %197 = vmatprep.subr.mxu0 0.0
    %198 = vmatpush1.msra.mxu0 0.0
    %199 = vmatprep.subr.mxu0 0.0
    %200 = vmatpush1.msra.mxu0 0.0
    %201 = vmatprep.subr.mxu0 0.0
    %202 = vmatpush1.msra.mxu0 0.0
    %203 = vmatprep.subr.mxu0 0.0
    %204 = vmatpush1.msra.mxu0 0.0
    %205 = vmatprep.subr.mxu0 0.0
    %206 = vmatpush1.msra.mxu0 0.0
    %207 = vmatprep.subr.mxu0 0.0
    %208 = vmatpush1.msra.mxu0 0.0
    %209 = vmatprep.subr.mxu0 0.0
    %210 = vmatpush1.msra.mxu0 0.0
    %211 = vmatprep.subr.mxu0 0.0
    %212 = vmatpush1.msra.mxu0 0.0
    %213 = vmatprep.subr.mxu0 0.0
    %214 = vmatpush1.msra.mxu0 0.0
    %215 = vmatprep.subr.mxu0 0.0
    %216 = vmatpush1.msra.mxu0 0.0
    %217 = vmatprep.subr.mxu0 0.0
    %218 = vmatpush1.msra.mxu0 0.0
    %219 = vmatprep.subr.mxu0 0.0
    %220 = vmatpush1.msra.mxu0 0.0
    %221 = vmatprep.subr.mxu0 0.0
    %222 = vmatpush1.msra.mxu0 0.0
    %223 = vmatprep.mubr.f32.mxu0 0.0
    %224 = vmatmul.mubr.f32.gmra.mrb[0].mxu0 %v151
    %v225 = vpop.f32.mrb[0].mxu0
    %v226 = vadd.f32 %v142, %v225
    %v227 = vpop.f32.mrb[0].mxu0
    %228 = vmatprep.mubr.f32.mxu0 0.0
    %229 = vmatmul.mubr.f32.gmra.mrb[0].mxu0 %v154
    %v230 = vpop.f32.mrb[0].mxu0
    %v231 = vadd.f32 %v147, %v230
    %v232 = vpop.f32.mrb[0].mxu0
    %233 = vdwg.mxu0
    %v234 = vld [vmem:[#allocation2 + $0x2] sm:$0xff]
    %v235 = vld [vmem:[#allocation2 + $0xa] sm:$0xff]
    %s236 = scalar_lea.vmem %s1, 32
    %v237 = vld [vmem:[%s236] sm:$0xff]
    %v238 = vld [vmem:[%s236 + $0x8] sm:$0x1f]
    %v240 = vsel %vm53, %v234, 0
    %v243 = vsel %vm53, %v235, 0
    %v246 = vsel %vm71, %v238, 0
    %248 = vmatprep.subr.mxu0 0.0
    %249 = vmatpush1.msra.mxu0 %v237
    %250 = vmatprep.subr.mxu0 0.0
    %251 = vmatpush1.msra.mxu0 %v246
    %252 = vmatprep.subr.mxu0 0.0
    %253 = vmatpush1.msra.mxu0 0.0
    %254 = vmatprep.subr.mxu0 0.0
    %255 = vmatpush1.msra.mxu0 0.0
    %256 = vmatprep.subr.mxu0 0.0
    %257 = vmatpush1.msra.mxu0 0.0
    %258 = vmatprep.subr.mxu0 0.0
    %259 = vmatpush1.msra.mxu0 0.0
    %260 = vmatprep.subr.mxu0 0.0
    %261 = vmatpush1.msra.mxu0 0.0
    %262 = vmatprep.subr.mxu0 0.0
    %263 = vmatpush1.msra.mxu0 0.0
    %264 = vmatprep.subr.mxu0 0.0
    %265 = vmatpush1.msra.mxu0 0.0
    %266 = vmatprep.subr.mxu0 0.0
    %267 = vmatpush1.msra.mxu0 0.0
    %268 = vmatprep.subr.mxu0 0.0
    %269 = vmatpush1.msra.mxu0 0.0
    %270 = vmatprep.subr.mxu0 0.0
    %271 = vmatpush1.msra.mxu0 0.0
    %272 = vmatprep.subr.mxu0 0.0
    %273 = vmatpush1.msra.mxu0 0.0
    %274 = vmatprep.subr.mxu0 0.0
    %275 = vmatpush1.msra.mxu0 0.0
    %276 = vmatprep.subr.mxu0 0.0
    %277 = vmatpush1.msra.mxu0 0.0
    %278 = vmatprep.subr.mxu0 0.0
    %279 = vmatpush1.msra.mxu0 0.0
    %280 = vmatprep.subr.mxu0 0.0
    %281 = vmatpush1.msra.mxu0 0.0
    %282 = vmatprep.subr.mxu0 0.0
    %283 = vmatpush1.msra.mxu0 0.0
    %284 = vmatprep.subr.mxu0 0.0
    %285 = vmatpush1.msra.mxu0 0.0
    %286 = vmatprep.subr.mxu0 0.0
    %287 = vmatpush1.msra.mxu0 0.0
    %288 = vmatprep.subr.mxu0 0.0
    %289 = vmatpush1.msra.mxu0 0.0
    %290 = vmatprep.subr.mxu0 0.0
    %291 = vmatpush1.msra.mxu0 0.0
    %292 = vmatprep.subr.mxu0 0.0
    %293 = vmatpush1.msra.mxu0 0.0
    %294 = vmatprep.subr.mxu0 0.0
    %295 = vmatpush1.msra.mxu0 0.0
    %296 = vmatprep.subr.mxu0 0.0
    %297 = vmatpush1.msra.mxu0 0.0
    %298 = vmatprep.subr.mxu0 0.0
    %299 = vmatpush1.msra.mxu0 0.0
    %300 = vmatprep.subr.mxu0 0.0
    %301 = vmatpush1.msra.mxu0 0.0
    %302 = vmatprep.subr.mxu0 0.0
    %303 = vmatpush1.msra.mxu0 0.0
    %304 = vmatprep.subr.mxu0 0.0
    %305 = vmatpush1.msra.mxu0 0.0
    %306 = vmatprep.subr.mxu0 0.0
    %307 = vmatpush1.msra.mxu0 0.0
    %308 = vmatprep.subr.mxu0 0.0
    %309 = vmatpush1.msra.mxu0 0.0
    %310 = vmatprep.subr.mxu0 0.0
    %311 = vmatpush1.msra.mxu0 0.0
    %312 = vmatprep.mubr.f32.mxu0 0.0
    %313 = vmatmul.mubr.f32.gmra.mrb[0].mxu0 %v240
    %v314 = vpop.f32.mrb[0].mxu0
    %v315 = vadd.f32 0.0, %v314
    %v316 = vpop.f32.mrb[0].mxu0
    %317 = vmatprep.mubr.f32.mxu0 0.0
    %318 = vmatmul.mubr.f32.gmra.mrb[0].mxu0 %v243
    %v319 = vpop.f32.mrb[0].mxu0
    %v320 = vadd.f32 0.0, %v319
    %v321 = vpop.f32.mrb[0].mxu0
    %322 = vdwg.mxu0
    %v323 = vadd.f32 %v226, %v315
    %v324 = vadd.f32 %v231, %v320
    %v325 = vld [vmem:[%s2] sm:$0x1]
    %v327 = vlaneseq
    %v328 = vshrl.u32 %v327, 7
    %v329 = vsub.s32 0, %v328
    %v330 = vrot.slane %v325, %v329
    %v332 = vadd.f32 %v323, %v330
    %v333 = vadd.f32 %v324, %v330
    %v334 = vmax.f32 %v332, 0.0
    %v335 = vmax.f32 %v333, 0.0
    %vm336 = vcmask 130048
    %v338 = vsel %vm336, %v40, 0
    %340 = vmatprep.subr.mxu0 0.0
    %341 = vmatpush1.msra.mxu0 %v334
    %342 = vmatprep.subr.mxu0 0.0
    %343 = vmatpush1.msra.mxu0 %v335
    %344 = vmatprep.subr.mxu0 0.0
    %345 = vmatpush1.msra.mxu0 0.0
    %346 = vmatprep.subr.mxu0 0.0
    %347 = vmatpush1.msra.mxu0 0.0
    %348 = vmatprep.subr.mxu0 0.0
    %349 = vmatpush1.msra.mxu0 0.0
    %350 = vmatprep.subr.mxu0 0.0
    %351 = vmatpush1.msra.mxu0 0.0
    %352 = vmatprep.subr.mxu0 0.0
    %353 = vmatpush1.msra.mxu0 0.0
    %354 = vmatprep.subr.mxu0 0.0
    %355 = vmatpush1.msra.mxu0 0.0
    %356 = vmatprep.subr.mxu0 0.0
    %357 = vmatpush1.msra.mxu0 0.0
    %358 = vmatprep.subr.mxu0 0.0
    %359 = vmatpush1.msra.mxu0 0.0
    %360 = vmatprep.subr.mxu0 0.0
    %361 = vmatpush1.msra.mxu0 0.0
    %362 = vmatprep.subr.mxu0 0.0
    %363 = vmatpush1.msra.mxu0 0.0
    %364 = vmatprep.subr.mxu0 0.0
    %365 = vmatpush1.msra.mxu0 0.0
    %366 = vmatprep.subr.mxu0 0.0
    %367 = vmatpush1.msra.mxu0 0.0
    %368 = vmatprep.subr.mxu0 0.0
    %369 = vmatpush1.msra.mxu0 0.0
    %370 = vmatprep.subr.mxu0 0.0
    %371 = vmatpush1.msra.mxu0 0.0
    %372 = vmatprep.subr.mxu0 0.0
    %373 = vmatpush1.msra.mxu0 0.0
    %374 = vmatprep.subr.mxu0 0.0
    %375 = vmatpush1.msra.mxu0 0.0
    %376 = vmatprep.subr.mxu0 0.0
    %377 = vmatpush1.msra.mxu0 0.0
    %378 = vmatprep.subr.mxu0 0.0
    %379 = vmatpush1.msra.mxu0 0.0
    %380 = vmatprep.subr.mxu0 0.0
    %381 = vmatpush1.msra.mxu0 0.0
    %382 = vmatprep.subr.mxu0 0.0
    %383 = vmatpush1.msra.mxu0 0.0
    %384 = vmatprep.subr.mxu0 0.0
    %385 = vmatpush1.msra.mxu0 0.0
    %386 = vmatprep.subr.mxu0 0.0
    %387 = vmatpush1.msra.mxu0 0.0
    %388 = vmatprep.subr.mxu0 0.0
    %389 = vmatpush1.msra.mxu0 0.0
    %390 = vmatprep.subr.mxu0 0.0
    %391 = vmatpush1.msra.mxu0 0.0
    %392 = vmatprep.subr.mxu0 0.0
    %393 = vmatpush1.msra.mxu0 0.0
    %394 = vmatprep.subr.mxu0 0.0
    %395 = vmatpush1.msra.mxu0 0.0
    %396 = vmatprep.subr.mxu0 0.0
    %397 = vmatpush1.msra.mxu0 0.0
    %398 = vmatprep.subr.mxu0 0.0
    %399 = vmatpush1.msra.mxu0 0.0
    %400 = vmatprep.subr.mxu0 0.0
    %401 = vmatpush1.msra.mxu0 0.0
    %402 = vmatprep.subr.mxu0 0.0
    %403 = vmatpush1.msra.mxu0 0.0
    %404 = vmatprep.mubr.f32.mxu0 0.0
    %405 = vmatmul.mubr.f32.gmra.mrb[0].mxu0 %v338
    %v406 = vpop.f32.mrb[0].mxu0
    %v407 = vadd.f32 0.0, %v406
    %v408 = vpop.f32.mrb[0].mxu0
    %409 = vdwg.mxu0
    %v411 = vsel %vm336, %v44, 0
    %413 = vmatprep.subr.mxu0 0.0
    %414 = vmatpush1.msra.mxu0 %v334
    %415 = vmatprep.subr.mxu0 0.0
    %416 = vmatpush1.msra.mxu0 %v335
    %417 = vmatprep.subr.mxu0 0.0
    %418 = vmatpush1.msra.mxu0 0.0
    %419 = vmatprep.subr.mxu0 0.0
    %420 = vmatpush1.msra.mxu0 0.0
    %421 = vmatprep.subr.mxu0 0.0
    %422 = vmatpush1.msra.mxu0 0.0
    %423 = vmatprep.subr.mxu0 0.0
    %424 = vmatpush1.msra.mxu0 0.0
    %425 = vmatprep.subr.mxu0 0.0
    %426 = vmatpush1.msra.mxu0 0.0
    %427 = vmatprep.subr.mxu0 0.0
    %428 = vmatpush1.msra.mxu0 0.0
    %429 = vmatprep.subr.mxu0 0.0
    %430 = vmatpush1.msra.mxu0 0.0
    %431 = vmatprep.subr.mxu0 0.0
    %432 = vmatpush1.msra.mxu0 0.0
    %433 = vmatprep.subr.mxu0 0.0
    %434 = vmatpush1.msra.mxu0 0.0
    %435 = vmatprep.subr.mxu0 0.0
    %436 = vmatpush1.msra.mxu0 0.0
    %437 = vmatprep.subr.mxu0 0.0
    %438 = vmatpush1.msra.mxu0 0.0
    %439 = vmatprep.subr.mxu0 0.0
    %440 = vmatpush1.msra.mxu0 0.0
    %441 = vmatprep.subr.mxu0 0.0
    %442 = vmatpush1.msra.mxu0 0.0
    %443 = vmatprep.subr.mxu0 0.0
    %444 = vmatpush1.msra.mxu0 0.0
    %445 = vmatprep.subr.mxu0 0.0
    %446 = vmatpush1.msra.mxu0 0.0
    %447 = vmatprep.subr.mxu0 0.0
    %448 = vmatpush1.msra.mxu0 0.0
    %449 = vmatprep.subr.mxu0 0.0
    %450 = vmatpush1.msra.mxu0 0.0
    %451 = vmatprep.subr.mxu0 0.0
    %452 = vmatpush1.msra.mxu0 0.0
    %453 = vmatprep.subr.mxu0 0.0
    %454 = vmatpush1.msra.mxu0 0.0
    %455 = vmatprep.subr.mxu0 0.0
    %456 = vmatpush1.msra.mxu0 0.0
    %457 = vmatprep.subr.mxu0 0.0
    %458 = vmatpush1.msra.mxu0 0.0
    %459 = vmatprep.subr.mxu0 0.0
    %460 = vmatpush1.msra.mxu0 0.0
    %461 = vmatprep.subr.mxu0 0.0
    %462 = vmatpush1.msra.mxu0 0.0
    %463 = vmatprep.subr.mxu0 0.0
    %464 = vmatpush1.msra.mxu0 0.0
    %465 = vmatprep.subr.mxu0 0.0
    %466 = vmatpush1.msra.mxu0 0.0
    %467 = vmatprep.subr.mxu0 0.0
    %468 = vmatpush1.msra.mxu0 0.0
    %469 = vmatprep.subr.mxu0 0.0
    %470 = vmatpush1.msra.mxu0 0.0
    %471 = vmatprep.subr.mxu0 0.0
    %472 = vmatpush1.msra.mxu0 0.0
    %473 = vmatprep.subr.mxu0 0.0
    %474 = vmatpush1.msra.mxu0 0.0
    %475 = vmatprep.subr.mxu0 0.0
    %476 = vmatpush1.msra.mxu0 0.0
    %477 = vmatprep.mubr.f32.mxu0 0.0
    %478 = vmatmul.mubr.f32.gmra.mrb[0].mxu0 %v411
    %v479 = vpop.f32.mrb[0].mxu0
    %v480 = vadd.f32 0.0, %v479
    %v481 = vpop.f32.mrb[0].mxu0
    %482 = vdwg.mxu0
    %v483 = vmax.f32 %v407, %v480
    %vm484 = vcmask 261120
    %485 = vst.msk [vmem:[#allocation3 + $0x1] sm:$0xff] %vm484, %v483
    %v486 = vld [vmem:[#allocation3] sm:$0xff]
    %v487 = vld [vmem:[%s3] sm:$0xff]
    %v488 = vld [vmem:[%s3 + $0x8] sm:$0xff]
    %v489 = vld [vmem:[%s3 + $0x10] sm:$0xff]
    %v490 = vld [vmem:[%s3 + $0x18] sm:$0xff]
    %v491 = vld [vmem:[#allocation3 + $0x1] sm:$0xff]
    %s492 = scalar_lea.vmem %s3, 32
    %v493 = vld [vmem:[%s492] sm:$0xff]
    %v494 = vld [vmem:[%s492 + $0x8] sm:$0xff]
    %v495 = vld [vmem:[%s492 + $0x10] sm:$0xff]
    %v496 = vld [vmem:[%s492 + $0x18] sm:$0xff]
    %v498 = vsel %vm484, %v491, 0
    %500 = vmatprep.subr.mxu0 0.0
    %501 = vmatpush1.msra.mxu0 %v493
    %502 = vmatprep.subr.mxu0 0.0
    %503 = vmatpush1.msra.mxu0 %v494
    %504 = vmatprep.subr.mxu0 0.0
    %505 = vmatpush1.msra.mxu0 %v495
    %506 = vmatprep.subr.mxu0 0.0
    %507 = vmatpush1.msra.mxu0 %v496
    %508 = vmatprep.subr.mxu0 0.0
    %509 = vmatpush1.msra.mxu0 0.0
    %510 = vmatprep.subr.mxu0 0.0
    %511 = vmatpush1.msra.mxu0 0.0
    %512 = vmatprep.subr.mxu0 0.0
    %513 = vmatpush1.msra.mxu0 0.0
    %514 = vmatprep.subr.mxu0 0.0
    %515 = vmatpush1.msra.mxu0 0.0
    %516 = vmatprep.subr.mxu0 0.0
    %517 = vmatpush1.msra.mxu0 0.0
    %518 = vmatprep.subr.mxu0 0.0
    %519 = vmatpush1.msra.mxu0 0.0
    %520 = vmatprep.subr.mxu0 0.0
    %521 = vmatpush1.msra.mxu0 0.0
    %522 = vmatprep.subr.mxu0 0.0
    %523 = vmatpush1.msra.mxu0 0.0
    %524 = vmatprep.subr.mxu0 0.0
    %525 = vmatpush1.msra.mxu0 0.0
    %526 = vmatprep.subr.mxu0 0.0
    %527 = vmatpush1.msra.mxu0 0.0
    %528 = vmatprep.subr.mxu0 0.0
    %529 = vmatpush1.msra.mxu0 0.0
    %530 = vmatprep.subr.mxu0 0.0
    %531 = vmatpush1.msra.mxu0 0.0
    %532 = vmatprep.subr.mxu0 0.0
    %533 = vmatpush1.msra.mxu0 0.0
    %534 = vmatprep.subr.mxu0 0.0
    %535 = vmatpush1.msra.mxu0 0.0
    %536 = vmatprep.subr.mxu0 0.0
    %537 = vmatpush1.msra.mxu0 0.0
    %538 = vmatprep.subr.mxu0 0.0
    %539 = vmatpush1.msra.mxu0 0.0
    %540 = vmatprep.subr.mxu0 0.0
    %541 = vmatpush1.msra.mxu0 0.0
    %542 = vmatprep.subr.mxu0 0.0
    %543 = vmatpush1.msra.mxu0 0.0
    %544 = vmatprep.subr.mxu0 0.0
    %545 = vmatpush1.msra.mxu0 0.0
    %546 = vmatprep.subr.mxu0 0.0
    %547 = vmatpush1.msra.mxu0 0.0
    %548 = vmatprep.subr.mxu0 0.0
    %549 = vmatpush1.msra.mxu0 0.0
    %550 = vmatprep.subr.mxu0 0.0
    %551 = vmatpush1.msra.mxu0 0.0
    %552 = vmatprep.subr.mxu0 0.0
    %553 = vmatpush1.msra.mxu0 0.0
    %554 = vmatprep.subr.mxu0 0.0
    %555 = vmatpush1.msra.mxu0 0.0
    %556 = vmatprep.subr.mxu0 0.0
    %557 = vmatpush1.msra.mxu0 0.0
    %558 = vmatprep.subr.mxu0 0.0
    %559 = vmatpush1.msra.mxu0 0.0
    %560 = vmatprep.subr.mxu0 0.0
    %561 = vmatpush1.msra.mxu0 0.0
    %562 = vmatprep.subr.mxu0 0.0
    %563 = vmatpush1.msra.mxu0 0.0
    %564 = vmatprep.mubr.f32.mxu0 0.0
    %565 = vmatmul.mubr.f32.gmra.mrb[0].mxu0 %v498
    %v566 = vpop.f32.mrb[0].mxu0
    %v567 = vadd.f32 0.0, %v566
    %v568 = vpop.f32.mrb[0].mxu0
    %569 = vdwg.mxu0
    %v571 = vsel %vm484, %v486, 0
    %573 = vmatprep.subr.mxu0 0.0
    %574 = vmatpush1.msra.mxu0 %v487
    %575 = vmatprep.subr.mxu0 0.0
    %576 = vmatpush1.msra.mxu0 %v488
    %577 = vmatprep.subr.mxu0 0.0
    %578 = vmatpush1.msra.mxu0 %v489
    %579 = vmatprep.subr.mxu0 0.0
    %580 = vmatpush1.msra.mxu0 %v490
    %581 = vmatprep.subr.mxu0 0.0
    %582 = vmatpush1.msra.mxu0 0.0
    %583 = vmatprep.subr.mxu0 0.0
    %584 = vmatpush1.msra.mxu0 0.0
    %585 = vmatprep.subr.mxu0 0.0
    %586 = vmatpush1.msra.mxu0 0.0
    %587 = vmatprep.subr.mxu0 0.0
    %588 = vmatpush1.msra.mxu0 0.0
    %589 = vmatprep.subr.mxu0 0.0
    %590 = vmatpush1.msra.mxu0 0.0
    %591 = vmatprep.subr.mxu0 0.0
    %592 = vmatpush1.msra.mxu0 0.0
    %593 = vmatprep.subr.mxu0 0.0
    %594 = vmatpush1.msra.mxu0 0.0
    %595 = vmatprep.subr.mxu0 0.0
    %596 = vmatpush1.msra.mxu0 0.0
    %597 = vmatprep.subr.mxu0 0.0
    %598 = vmatpush1.msra.mxu0 0.0
    %599 = vmatprep.subr.mxu0 0.0
    %600 = vmatpush1.msra.mxu0 0.0
    %601 = vmatprep.subr.mxu0 0.0
    %602 = vmatpush1.msra.mxu0 0.0
    %603 = vmatprep.subr.mxu0 0.0
    %604 = vmatpush1.msra.mxu0 0.0
    %605 = vmatprep.subr.mxu0 0.0
    %606 = vmatpush1.msra.mxu0 0.0
    %607 = vmatprep.subr.mxu0 0.0
    %608 = vmatpush1.msra.mxu0 0.0
    %609 = vmatprep.subr.mxu0 0.0
    %610 = vmatpush1.msra.mxu0 0.0
    %611 = vmatprep.subr.mxu0 0.0
    %612 = vmatpush1.msra.mxu0 0.0
    %613 = vmatprep.subr.mxu0 0.0
    %614 = vmatpush1.msra.mxu0 0.0
    %615 = vmatprep.subr.mxu0 0.0
    %616 = vmatpush1.msra.mxu0 0.0
    %617 = vmatprep.subr.mxu0 0.0
    %618 = vmatpush1.msra.mxu0 0.0
    %619 = vmatprep.subr.mxu0 0.0
    %620 = vmatpush1.msra.mxu0 0.0
    %621 = vmatprep.subr.mxu0 0.0
    %622 = vmatpush1.msra.mxu0 0.0
    %623 = vmatprep.subr.mxu0 0.0
    %624 = vmatpush1.msra.mxu0 0.0
    %625 = vmatprep.subr.mxu0 0.0
    %626 = vmatpush1.msra.mxu0 0.0
    %627 = vmatprep.subr.mxu0 0.0
    %628 = vmatpush1.msra.mxu0 0.0
    %629 = vmatprep.subr.mxu0 0.0
    %630 = vmatpush1.msra.mxu0 0.0
    %631 = vmatprep.subr.mxu0 0.0
    %632 = vmatpush1.msra.mxu0 0.0
    %633 = vmatprep.subr.mxu0 0.0
    %634 = vmatpush1.msra.mxu0 0.0
    %635 = vmatprep.subr.mxu0 0.0
    %636 = vmatpush1.msra.mxu0 0.0
    %637 = vmatprep.mubr.f32.mxu0 0.0
    %638 = vmatmul.mubr.f32.gmra.mrb[0].mxu0 %v571
    %v639 = vpop.f32.mrb[0].mxu0
    %v640 = vadd.f32 %v567, %v639
    %v641 = vpop.f32.mrb[0].mxu0
    %642 = vdwg.mxu0
    %v643 = vld [vmem:[#allocation3 + $0x2] sm:$0xff]
    %s644 = scalar_lea.vmem %s3, 64
    %v645 = vld [vmem:[%s644] sm:$0xff]
    %v646 = vld [vmem:[%s644 + $0x8] sm:$0xff]
    %v647 = vld [vmem:[%s644 + $0x10] sm:$0xff]
    %v648 = vld [vmem:[%s644 + $0x18] sm:$0xff]
    %v650 = vsel %vm484, %v643, 0
    %652 = vmatprep.subr.mxu0 0.0
    %653 = vmatpush1.msra.mxu0 %v645
    %654 = vmatprep.subr.mxu0 0.0
    %655 = vmatpush1.msra.mxu0 %v646
    %656 = vmatprep.subr.mxu0 0.0
    %657 = vmatpush1.msra.mxu0 %v647
    %658 = vmatprep.subr.mxu0 0.0
    %659 = vmatpush1.msra.mxu0 %v648
    %660 = vmatprep.subr.mxu0 0.0
    %661 = vmatpush1.msra.mxu0 0.0
    %662 = vmatprep.subr.mxu0 0.0
    %663 = vmatpush1.msra.mxu0 0.0
    %664 = vmatprep.subr.mxu0 0.0
    %665 = vmatpush1.msra.mxu0 0.0
    %666 = vmatprep.subr.mxu0 0.0
    %667 = vmatpush1.msra.mxu0 0.0
    %668 = vmatprep.subr.mxu0 0.0
    %669 = vmatpush1.msra.mxu0 0.0
    %670 = vmatprep.subr.mxu0 0.0
    %671 = vmatpush1.msra.mxu0 0.0
    %672 = vmatprep.subr.mxu0 0.0
    %673 = vmatpush1.msra.mxu0 0.0
    %674 = vmatprep.subr.mxu0 0.0
    %675 = vmatpush1.msra.mxu0 0.0
    %676 = vmatprep.subr.mxu0 0.0
    %677 = vmatpush1.msra.mxu0 0.0
    %678 = vmatprep.subr.mxu0 0.0
    %679 = vmatpush1.msra.mxu0 0.0
    %680 = vmatprep.subr.mxu0 0.0
    %681 = vmatpush1.msra.mxu0 0.0
    %682 = vmatprep.subr.mxu0 0.0
    %683 = vmatpush1.msra.mxu0 0.0
    %684 = vmatprep.subr.mxu0 0.0
    %685 = vmatpush1.msra.mxu0 0.0
    %686 = vmatprep.subr.mxu0 0.0
    %687 = vmatpush1.msra.mxu0 0.0
    %688 = vmatprep.subr.mxu0 0.0
    %689 = vmatpush1.msra.mxu0 0.0
    %690 = vmatprep.subr.mxu0 0.0
    %691 = vmatpush1.msra.mxu0 0.0
    %692 = vmatprep.subr.mxu0 0.0
    %693 = vmatpush1.msra.mxu0 0.0
    %694 = vmatprep.subr.mxu0 0.0
    %695 = vmatpush1.msra.mxu0 0.0
    %696 = vmatprep.subr.mxu0 0.0
    %697 = vmatpush1.msra.mxu0 0.0
    %698 = vmatprep.subr.mxu0 0.0
    %699 = vmatpush1.msra.mxu0 0.0
    %700 = vmatprep.subr.mxu0 0.0
    %701 = vmatpush1.msra.mxu0 0.0
    %702 = vmatprep.subr.mxu0 0.0
    %703 = vmatpush1.msra.mxu0 0.0
    %704 = vmatprep.subr.mxu0 0.0
    %705 = vmatpush1.msra.mxu0 0.0
    %706 = vmatprep.subr.mxu0 0.0
    %707 = vmatpush1.msra.mxu0 0.0
    %708 = vmatprep.subr.mxu0 0.0
    %709 = vmatpush1.msra.mxu0 0.0
    %710 = vmatprep.subr.mxu0 0.0
    %711 = vmatpush1.msra.mxu0 0.0
    %712 = vmatprep.subr.mxu0 0.0
    %713 = vmatpush1.msra.mxu0 0.0
    %714 = vmatprep.subr.mxu0 0.0
    %715 = vmatpush1.msra.mxu0 0.0
    %716 = vmatprep.mubr.f32.mxu0 0.0
    %717 = vmatmul.mubr.f32.gmra.mrb[0].mxu0 %v650
    %v718 = vpop.f32.mrb[0].mxu0
    %v719 = vadd.f32 0.0, %v718
    %v720 = vpop.f32.mrb[0].mxu0
    %721 = vdwg.mxu0
    %v722 = vadd.f32 %v640, %v719
    %v723 = vld [vmem:[%s4] sm:$0x1]
    %v725 = vlaneseq
    %v726 = vshrl.u32 %v725, 7
    %v727 = vsub.s32 0, %v726
    %v728 = vrot.slane %v723, %v727
    %v730 = vadd.f32 %v722, %v728
    %v731 = vmax.f32 %v730, 0.0
    %vm732 = vcmask 64512
    %v733 = vsel %vm732, %v40, 0
    %735 = vmatprep.subr.mxu0 0.0
    %736 = vmatpush1.msra.mxu0 %v731
    %737 = vmatprep.subr.mxu0 0.0
    %738 = vmatpush1.msra.mxu0 0.0
    %739 = vmatprep.subr.mxu0 0.0
    %740 = vmatpush1.msra.mxu0 0.0
    %741 = vmatprep.subr.mxu0 0.0
    %742 = vmatpush1.msra.mxu0 0.0
    %743 = vmatprep.subr.mxu0 0.0
    %744 = vmatpush1.msra.mxu0 0.0
    %745 = vmatprep.subr.mxu0 0.0
    %746 = vmatpush1.msra.mxu0 0.0
    %747 = vmatprep.subr.mxu0 0.0
    %748 = vmatpush1.msra.mxu0 0.0
    %749 = vmatprep.subr.mxu0 0.0
    %750 = vmatpush1.msra.mxu0 0.0
    %751 = vmatprep.subr.mxu0 0.0
    %752 = vmatpush1.msra.mxu0 0.0
    %753 = vmatprep.subr.mxu0 0.0
    %754 = vmatpush1.msra.mxu0 0.0
    %755 = vmatprep.subr.mxu0 0.0
    %756 = vmatpush1.msra.mxu0 0.0
    %757 = vmatprep.subr.mxu0 0.0
    %758 = vmatpush1.msra.mxu0 0.0
    %759 = vmatprep.subr.mxu0 0.0
    %760 = vmatpush1.msra.mxu0 0.0
    %761 = vmatprep.subr.mxu0 0.0
    %762 = vmatpush1.msra.mxu0 0.0
    %763 = vmatprep.subr.mxu0 0.0
    %764 = vmatpush1.msra.mxu0 0.0
    %765 = vmatprep.subr.mxu0 0.0
    %766 = vmatpush1.msra.mxu0 0.0
    %767 = vmatprep.subr.mxu0 0.0
    %768 = vmatpush1.msra.mxu0 0.0
    %769 = vmatprep.subr.mxu0 0.0
    %770 = vmatpush1.msra.mxu0 0.0
    %771 = vmatprep.subr.mxu0 0.0
    %772 = vmatpush1.msra.mxu0 0.0
    %773 = vmatprep.subr.mxu0 0.0
    %774 = vmatpush1.msra.mxu0 0.0
    %775 = vmatprep.subr.mxu0 0.0
    %776 = vmatpush1.msra.mxu0 0.0
    %777 = vmatprep.subr.mxu0 0.0
    %778 = vmatpush1.msra.mxu0 0.0
    %779 = vmatprep.subr.mxu0 0.0
    %780 = vmatpush1.msra.mxu0 0.0
    %781 = vmatprep.subr.mxu0 0.0
    %782 = vmatpush1.msra.mxu0 0.0
    %783 = vmatprep.subr.mxu0 0.0
    %784 = vmatpush1.msra.mxu0 0.0
    %785 = vmatprep.subr.mxu0 0.0
    %786 = vmatpush1.msra.mxu0 0.0
    %787 = vmatprep.subr.mxu0 0.0
    %788 = vmatpush1.msra.mxu0 0.0
    %789 = vmatprep.subr.mxu0 0.0
    %790 = vmatpush1.msra.mxu0 0.0
    %791 = vmatprep.subr.mxu0 0.0
    %792 = vmatpush1.msra.mxu0 0.0
    %793 = vmatprep.subr.mxu0 0.0
    %794 = vmatpush1.msra.mxu0 0.0
    %795 = vmatprep.subr.mxu0 0.0
    %796 = vmatpush1.msra.mxu0 0.0
    %797 = vmatprep.subr.mxu0 0.0
    %798 = vmatpush1.msra.mxu0 0.0
    %799 = vmatprep.mubr.f32.mxu0 0.0
    %800 = vmatmul.mubr.f32.gmra.mrb[0].mxu0 %v733
    %v801 = vpop.f32.mrb[0].mxu0
    %v802 = vadd.f32 0.0, %v801
    %v803 = vpop.f32.mrb[0].mxu0
    %804 = vdwg.mxu0
    %v805 = vsel %vm732, %v44, 0
    %807 = vmatprep.subr.mxu0 0.0
    %808 = vmatpush1.msra.mxu0 %v731
    %809 = vmatprep.subr.mxu0 0.0
    %810 = vmatpush1.msra.mxu0 0.0
    %811 = vmatprep.subr.mxu0 0.0
    %812 = vmatpush1.msra.mxu0 0.0
    %813 = vmatprep.subr.mxu0 0.0
    %814 = vmatpush1.msra.mxu0 0.0
    %815 = vmatprep.subr.mxu0 0.0
    %816 = vmatpush1.msra.mxu0 0.0
    %817 = vmatprep.subr.mxu0 0.0
    %818 = vmatpush1.msra.mxu0 0.0
    %819 = vmatprep.subr.mxu0 0.0
    %820 = vmatpush1.msra.mxu0 0.0
    %821 = vmatprep.subr.mxu0 0.0
    %822 = vmatpush1.msra.mxu0 0.0
    %823 = vmatprep.subr.mxu0 0.0
    %824 = vmatpush1.msra.mxu0 0.0
    %825 = vmatprep.subr.mxu0 0.0
    %826 = vmatpush1.msra.mxu0 0.0
    %827 = vmatprep.subr.mxu0 0.0
    %828 = vmatpush1.msra.mxu0 0.0
    %829 = vmatprep.subr.mxu0 0.0
    %830 = vmatpush1.msra.mxu0 0.0
    %831 = vmatprep.subr.mxu0 0.0
    %832 = vmatpush1.msra.mxu0 0.0
    %833 = vmatprep.subr.mxu0 0.0
    %834 = vmatpush1.msra.mxu0 0.0
    %835 = vmatprep.subr.mxu0 0.0
    %836 = vmatpush1.msra.mxu0 0.0
    %837 = vmatprep.subr.mxu0 0.0
    %838 = vmatpush1.msra.mxu0 0.0
    %839 = vmatprep.subr.mxu0 0.0
    %840 = vmatpush1.msra.mxu0 0.0
    %841 = vmatprep.subr.mxu0 0.0
    %842 = vmatpush1.msra.mxu0 0.0
    %843 = vmatprep.subr.mxu0 0.0
    %844 = vmatpush1.msra.mxu0 0.0
    %845 = vmatprep.subr.mxu0 0.0
    %846 = vmatpush1.msra.mxu0 0.0
    %847 = vmatprep.subr.mxu0 0.0
    %848 = vmatpush1.msra.mxu0 0.0
    %849 = vmatprep.subr.mxu0 0.0
    %850 = vmatpush1.msra.mxu0 0.0
    %851 = vmatprep.subr.mxu0 0.0
    %852 = vmatpush1.msra.mxu0 0.0
    %853 = vmatprep.subr.mxu0 0.0
    %854 = vmatpush1.msra.mxu0 0.0
    %855 = vmatprep.subr.mxu0 0.0
    %856 = vmatpush1.msra.mxu0 0.0
    %857 = vmatprep.subr.mxu0 0.0
    %858 = vmatpush1.msra.mxu0 0.0
    %859 = vmatprep.subr.mxu0 0.0
    %860 = vmatpush1.msra.mxu0 0.0
    %861 = vmatprep.subr.mxu0 0.0
    %862 = vmatpush1.msra.mxu0 0.0
    %863 = vmatprep.subr.mxu0 0.0
    %864 = vmatpush1.msra.mxu0 0.0
    %865 = vmatprep.subr.mxu0 0.0
    %866 = vmatpush1.msra.mxu0 0.0
    %867 = vmatprep.subr.mxu0 0.0
    %868 = vmatpush1.msra.mxu0 0.0
    %869 = vmatprep.subr.mxu0 0.0
    %870 = vmatpush1.msra.mxu0 0.0
    %871 = vmatprep.mubr.f32.mxu0 0.0
    %872 = vmatmul.mubr.f32.gmra.mrb[0].mxu0 %v805
    %v873 = vpop.f32.mrb[0].mxu0
    %v874 = vadd.f32 0.0, %v873
    %v875 = vpop.f32.mrb[0].mxu0
    %876 = vdwg.mxu0
    %v877 = vmax.f32 %v802, %v874
    %v878 = vld [vmem:[%s5] sm:$0xff]
    %v879 = vld [vmem:[%s5 + $0x8] sm:$0xff]
    %v880 = vld [vmem:[%s5 + $0x10] sm:$0xff]
    %v881 = vld [vmem:[%s5 + $0x18] sm:$0xff]
    %v882 = vld [vmem:[%s5 + $0x20] sm:$0xff]
    %v883 = vld [vmem:[%s5 + $0x28] sm:$0xff]
    %v884 = vld [vmem:[%s5 + $0x30] sm:$0xff]
    %v885 = vld [vmem:[%s5 + $0x38] sm:$0xff]
    %v886 = vld [vmem:[%s5 + $0x40] sm:$0xff]
    %v887 = vld [vmem:[%s5 + $0x48] sm:$0xff]
    %v888 = vld [vmem:[%s5 + $0x50] sm:$0xff]
    %v889 = vld [vmem:[%s5 + $0x58] sm:$0xff]
    %v890 = vld [vmem:[%s5 + $0x60] sm:$0xff]
    %v891 = vld [vmem:[%s5 + $0x68] sm:$0xff]
    %v892 = vld [vmem:[%s5 + $0x70] sm:$0xff]
    %v893 = vld [vmem:[%s5 + $0x78] sm:$0xff]
    %v895 = vrot.slane %v877, 1
    %vm896 = vcmask 523264
    %v897 = vsel %vm896, %v895, 0
    %899 = vmatprep.subr.mxu0 0.0
    %900 = vmatpush1.msra.mxu0 %v886
    %901 = vmatprep.subr.mxu0 0.0
    %902 = vmatpush1.msra.mxu0 %v887
    %903 = vmatprep.subr.mxu0 0.0
    %904 = vmatpush1.msra.mxu0 %v888
    %905 = vmatprep.subr.mxu0 0.0
    %906 = vmatpush1.msra.mxu0 %v889
    %907 = vmatprep.subr.mxu0 0.0
    %908 = vmatpush1.msra.mxu0 %v890
    %909 = vmatprep.subr.mxu0 0.0
    %910 = vmatpush1.msra.mxu0 %v891
    %911 = vmatprep.subr.mxu0 0.0
    %912 = vmatpush1.msra.mxu0 %v892
    %913 = vmatprep.subr.mxu0 0.0
    %914 = vmatpush1.msra.mxu0 %v893
    %915 = vmatprep.subr.mxu0 0.0
    %916 = vmatpush1.msra.mxu0 0.0
    %917 = vmatprep.subr.mxu0 0.0
    %918 = vmatpush1.msra.mxu0 0.0
    %919 = vmatprep.subr.mxu0 0.0
    %920 = vmatpush1.msra.mxu0 0.0
    %921 = vmatprep.subr.mxu0 0.0
    %922 = vmatpush1.msra.mxu0 0.0
    %923 = vmatprep.subr.mxu0 0.0
    %924 = vmatpush1.msra.mxu0 0.0
    %925 = vmatprep.subr.mxu0 0.0
    %926 = vmatpush1.msra.mxu0 0.0
    %927 = vmatprep.subr.mxu0 0.0
    %928 = vmatpush1.msra.mxu0 0.0
    %929 = vmatprep.subr.mxu0 0.0
    %930 = vmatpush1.msra.mxu0 0.0
    %931 = vmatprep.subr.mxu0 0.0
    %932 = vmatpush1.msra.mxu0 0.0
    %933 = vmatprep.subr.mxu0 0.0
    %934 = vmatpush1.msra.mxu0 0.0
    %935 = vmatprep.subr.mxu0 0.0
    %936 = vmatpush1.msra.mxu0 0.0
    %937 = vmatprep.subr.mxu0 0.0
    %938 = vmatpush1.msra.mxu0 0.0
    %939 = vmatprep.subr.mxu0 0.0
    %940 = vmatpush1.msra.mxu0 0.0
    %941 = vmatprep.subr.mxu0 0.0
    %942 = vmatpush1.msra.mxu0 0.0
    %943 = vmatprep.subr.mxu0 0.0
    %944 = vmatpush1.msra.mxu0 0.0
    %945 = vmatprep.subr.mxu0 0.0
    %946 = vmatpush1.msra.mxu0 0.0
    %947 = vmatprep.subr.mxu0 0.0
    %948 = vmatpush1.msra.mxu0 0.0
    %949 = vmatprep.subr.mxu0 0.0
    %950 = vmatpush1.msra.mxu0 0.0
    %951 = vmatprep.subr.mxu0 0.0
    %952 = vmatpush1.msra.mxu0 0.0
    %953 = vmatprep.subr.mxu0 0.0
    %954 = vmatpush1.msra.mxu0 0.0
    %955 = vmatprep.subr.mxu0 0.0
    %956 = vmatpush1.msra.mxu0 0.0
    %957 = vmatprep.subr.mxu0 0.0
    %958 = vmatpush1.msra.mxu0 0.0
    %959 = vmatprep.subr.mxu0 0.0
    %960 = vmatpush1.msra.mxu0 0.0
    %961 = vmatprep.subr.mxu0 0.0
    %962 = vmatpush1.msra.mxu0 0.0
    %963 = vmatprep.mubr.f32.mxu0 0.0
    %964 = vmatmul.mubr.f32.gmra.mrb[0].mxu0 %v897
    %v965 = vpop.f32.mrb[0].mxu0
    %v966 = vadd.f32 0.0, %v965
    %v967 = vpop.f32.mrb[0].mxu0
    %968 = vdwg.mxu0
    %v969 = vsel %vm896, %v877, 0
    %971 = vmatprep.subr.mxu0 0.0
    %972 = vmatpush1.msra.mxu0 %v878
    %973 = vmatprep.subr.mxu0 0.0
    %974 = vmatpush1.msra.mxu0 %v879
    %975 = vmatprep.subr.mxu0 0.0
    %976 = vmatpush1.msra.mxu0 %v880
    %977 = vmatprep.subr.mxu0 0.0
    %978 = vmatpush1.msra.mxu0 %v881
    %979 = vmatprep.subr.mxu0 0.0
    %980 = vmatpush1.msra.mxu0 %v882
    %981 = vmatprep.subr.mxu0 0.0
    %982 = vmatpush1.msra.mxu0 %v883
    %983 = vmatprep.subr.mxu0 0.0
    %984 = vmatpush1.msra.mxu0 %v884
    %985 = vmatprep.subr.mxu0 0.0
    %986 = vmatpush1.msra.mxu0 %v885
    %987 = vmatprep.subr.mxu0 0.0
    %988 = vmatpush1.msra.mxu0 0.0
    %989 = vmatprep.subr.mxu0 0.0
    %990 = vmatpush1.msra.mxu0 0.0
    %991 = vmatprep.subr.mxu0 0.0
    %992 = vmatpush1.msra.mxu0 0.0
    %993 = vmatprep.subr.mxu0 0.0
    %994 = vmatpush1.msra.mxu0 0.0
    %995 = vmatprep.subr.mxu0 0.0
    %996 = vmatpush1.msra.mxu0 0.0
    %997 = vmatprep.subr.mxu0 0.0
    %998 = vmatpush1.msra.mxu0 0.0
    %999 = vmatprep.subr.mxu0 0.0
    %1000 = vmatpush1.msra.mxu0 0.0
    %1001 = vmatprep.subr.mxu0 0.0
    %1002 = vmatpush1.msra.mxu0 0.0
    %1003 = vmatprep.subr.mxu0 0.0
    %1004 = vmatpush1.msra.mxu0 0.0
    %1005 = vmatprep.subr.mxu0 0.0
    %1006 = vmatpush1.msra.mxu0 0.0
    %1007 = vmatprep.subr.mxu0 0.0
    %1008 = vmatpush1.msra.mxu0 0.0
    %1009 = vmatprep.subr.mxu0 0.0
    %1010 = vmatpush1.msra.mxu0 0.0
    %1011 = vmatprep.subr.mxu0 0.0
    %1012 = vmatpush1.msra.mxu0 0.0
    %1013 = vmatprep.subr.mxu0 0.0
    %1014 = vmatpush1.msra.mxu0 0.0
    %1015 = vmatprep.subr.mxu0 0.0
    %1016 = vmatpush1.msra.mxu0 0.0
    %1017 = vmatprep.subr.mxu0 0.0
    %1018 = vmatpush1.msra.mxu0 0.0
    %1019 = vmatprep.subr.mxu0 0.0
    %1020 = vmatpush1.msra.mxu0 0.0
    %1021 = vmatprep.subr.mxu0 0.0
    %1022 = vmatpush1.msra.mxu0 0.0
    %1023 = vmatprep.subr.mxu0 0.0
    %1024 = vmatpush1.msra.mxu0 0.0
    %1025 = vmatprep.subr.mxu0 0.0
    %1026 = vmatpush1.msra.mxu0 0.0
    %1027 = vmatprep.subr.mxu0 0.0
    %1028 = vmatpush1.msra.mxu0 0.0
    %1029 = vmatprep.subr.mxu0 0.0
    %1030 = vmatpush1.msra.mxu0 0.0
    %1031 = vmatprep.subr.mxu0 0.0
    %1032 = vmatpush1.msra.mxu0 0.0
    %1033 = vmatprep.subr.mxu0 0.0
    %1034 = vmatpush1.msra.mxu0 0.0
    %1035 = vmatprep.mubr.f32.mxu0 0.0
    %1036 = vmatmul.mubr.f32.gmra.mrb[0].mxu0 %v969
    %v1037 = vpop.f32.mrb[0].mxu0
    %v1038 = vadd.f32 %v966, %v1037
    %v1039 = vpop.f32.mrb[0].mxu0
    %1040 = vdwg.mxu0
    %v1041 = vld [vmem:[%s5 + $0x80] sm:$0xff]
    %v1042 = vld [vmem:[%s5 + $0x88] sm:$0xff]
    %v1043 = vld [vmem:[%s5 + $0x90] sm:$0xff]
    %v1044 = vld [vmem:[%s5 + $0x98] sm:$0xff]
    %v1045 = vld [vmem:[%s5 + $0xa0] sm:$0xff]
    %v1046 = vld [vmem:[%s5 + $0xa8] sm:$0xff]
    %v1047 = vld [vmem:[%s5 + $0xb0] sm:$0xff]
    %v1048 = vld [vmem:[%s5 + $0xb8] sm:$0xff]
    %v1049 = vrot.slane %v877, 2
    %v1050 = vsel %vm896, %v1049, 0
    %1052 = vmatprep.subr.mxu0 0.0
    %1053 = vmatpush1.msra.mxu0 %v1041
    %1054 = vmatprep.subr.mxu0 0.0
    %1055 = vmatpush1.msra.mxu0 %v1042
    %1056 = vmatprep.subr.mxu0 0.0
    %1057 = vmatpush1.msra.mxu0 %v1043
    %1058 = vmatprep.subr.mxu0 0.0
    %1059 = vmatpush1.msra.mxu0 %v1044
    %1060 = vmatprep.subr.mxu0 0.0
    %1061 = vmatpush1.msra.mxu0 %v1045
    %1062 = vmatprep.subr.mxu0 0.0
    %1063 = vmatpush1.msra.mxu0 %v1046
    %1064 = vmatprep.subr.mxu0 0.0
    %1065 = vmatpush1.msra.mxu0 %v1047
    %1066 = vmatprep.subr.mxu0 0.0
    %1067 = vmatpush1.msra.mxu0 %v1048
    %1068 = vmatprep.subr.mxu0 0.0
    %1069 = vmatpush1.msra.mxu0 0.0
    %1070 = vmatprep.subr.mxu0 0.0
    %1071 = vmatpush1.msra.mxu0 0.0
    %1072 = vmatprep.subr.mxu0 0.0
    %1073 = vmatpush1.msra.mxu0 0.0
    %1074 = vmatprep.subr.mxu0 0.0
    %1075 = vmatpush1.msra.mxu0 0.0
    %1076 = vmatprep.subr.mxu0 0.0
    %1077 = vmatpush1.msra.mxu0 0.0
    %1078 = vmatprep.subr.mxu0 0.0
    %1079 = vmatpush1.msra.mxu0 0.0
    %1080 = vmatprep.subr.mxu0 0.0
    %1081 = vmatpush1.msra.mxu0 0.0
    %1082 = vmatprep.subr.mxu0 0.0
    %1083 = vmatpush1.msra.mxu0 0.0
    %1084 = vmatprep.subr.mxu0 0.0
    %1085 = vmatpush1.msra.mxu0 0.0
    %1086 = vmatprep.subr.mxu0 0.0
    %1087 = vmatpush1.msra.mxu0 0.0
    %1088 = vmatprep.subr.mxu0 0.0
    %1089 = vmatpush1.msra.mxu0 0.0
    %1090 = vmatprep.subr.mxu0 0.0
    %1091 = vmatpush1.msra.mxu0 0.0
    %1092 = vmatprep.subr.mxu0 0.0
    %1093 = vmatpush1.msra.mxu0 0.0
    %1094 = vmatprep.subr.mxu0 0.0
    %1095 = vmatpush1.msra.mxu0 0.0
    %1096 = vmatprep.subr.mxu0 0.0
    %1097 = vmatpush1.msra.mxu0 0.0
    %1098 = vmatprep.subr.mxu0 0.0
    %1099 = vmatpush1.msra.mxu0 0.0
    %1100 = vmatprep.subr.mxu0 0.0
    %1101 = vmatpush1.msra.mxu0 0.0
    %1102 = vmatprep.subr.mxu0 0.0
    %1103 = vmatpush1.msra.mxu0 0.0
    %1104 = vmatprep.subr.mxu0 0.0
    %1105 = vmatpush1.msra.mxu0 0.0
    %1106 = vmatprep.subr.mxu0 0.0
    %1107 = vmatpush1.msra.mxu0 0.0
    %1108 = vmatprep.subr.mxu0 0.0
    %1109 = vmatpush1.msra.mxu0 0.0
    %1110 = vmatprep.subr.mxu0 0.0
    %1111 = vmatpush1.msra.mxu0 0.0
    %1112 = vmatprep.subr.mxu0 0.0
    %1113 = vmatpush1.msra.mxu0 0.0
    %1114 = vmatprep.subr.mxu0 0.0
    %1115 = vmatpush1.msra.mxu0 0.0
    %1116 = vmatprep.mubr.f32.mxu0 0.0
    %1117 = vmatmul.mubr.f32.gmra.mrb[0].mxu0 %v1050
    %v1118 = vpop.f32.mrb[0].mxu0
    %v1119 = vadd.f32 0.0, %v1118
    %v1120 = vpop.f32.mrb[0].mxu0
    %1121 = vdwg.mxu0
    %v1122 = vadd.f32 %v1038, %v1119
    %v1123 = vld [vmem:[%s5 + $0xc0] sm:$0xff]
    %v1124 = vld [vmem:[%s5 + $0xc8] sm:$0xff]
    %v1125 = vld [vmem:[%s5 + $0xd0] sm:$0xff]
    %v1126 = vld [vmem:[%s5 + $0xd8] sm:$0xff]
    %v1127 = vld [vmem:[%s5 + $0xe0] sm:$0xff]
    %v1128 = vld [vmem:[%s5 + $0xe8] sm:$0xff]
    %v1129 = vld [vmem:[%s5 + $0xf0] sm:$0xff]
    %v1130 = vld [vmem:[%s5 + $0xf8] sm:$0xff]
    %v1131 = vrot.slane %v877, 3
    %v1132 = vsel %vm896, %v1131, 0
    %1134 = vmatprep.subr.mxu0 0.0
    %1135 = vmatpush1.msra.mxu0 %v1123
    %1136 = vmatprep.subr.mxu0 0.0
    %1137 = vmatpush1.msra.mxu0 %v1124
    %1138 = vmatprep.subr.mxu0 0.0
    %1139 = vmatpush1.msra.mxu0 %v1125
    %1140 = vmatprep.subr.mxu0 0.0
    %1141 = vmatpush1.msra.mxu0 %v1126
    %1142 = vmatprep.subr.mxu0 0.0
    %1143 = vmatpush1.msra.mxu0 %v1127
    %1144 = vmatprep.subr.mxu0 0.0
    %1145 = vmatpush1.msra.mxu0 %v1128
    %1146 = vmatprep.subr.mxu0 0.0
    %1147 = vmatpush1.msra.mxu0 %v1129
    %1148 = vmatprep.subr.mxu0 0.0
    %1149 = vmatpush1.msra.mxu0 %v1130
    %1150 = vmatprep.subr.mxu0 0.0
    %1151 = vmatpush1.msra.mxu0 0.0
    %1152 = vmatprep.subr.mxu0 0.0
    %1153 = vmatpush1.msra.mxu0 0.0
    %1154 = vmatprep.subr.mxu0 0.0
    %1155 = vmatpush1.msra.mxu0 0.0
    %1156 = vmatprep.subr.mxu0 0.0
    %1157 = vmatpush1.msra.mxu0 0.0
    %1158 = vmatprep.subr.mxu0 0.0
    %1159 = vmatpush1.msra.mxu0 0.0
    %1160 = vmatprep.subr.mxu0 0.0
    %1161 = vmatpush1.msra.mxu0 0.0
    %1162 = vmatprep.subr.mxu0 0.0
    %1163 = vmatpush1.msra.mxu0 0.0
    %1164 = vmatprep.subr.mxu0 0.0
    %1165 = vmatpush1.msra.mxu0 0.0
    %1166 = vmatprep.subr.mxu0 0.0
    %1167 = vmatpush1.msra.mxu0 0.0
    %1168 = vmatprep.subr.mxu0 0.0
    %1169 = vmatpush1.msra.mxu0 0.0
    %1170 = vmatprep.subr.mxu0 0.0
    %1171 = vmatpush1.msra.mxu0 0.0
    %1172 = vmatprep.subr.mxu0 0.0
    %1173 = vmatpush1.msra.mxu0 0.0
    %1174 = vmatprep.subr.mxu0 0.0
    %1175 = vmatpush1.msra.mxu0 0.0
    %1176 = vmatprep.subr.mxu0 0.0
    %1177 = vmatpush1.msra.mxu0 0.0
    %1178 = vmatprep.subr.mxu0 0.0
    %1179 = vmatpush1.msra.mxu0 0.0
    %1180 = vmatprep.subr.mxu0 0.0
    %1181 = vmatpush1.msra.mxu0 0.0
    %1182 = vmatprep.subr.mxu0 0.0
    %1183 = vmatpush1.msra.mxu0 0.0
    %1184 = vmatprep.subr.mxu0 0.0
    %1185 = vmatpush1.msra.mxu0 0.0
    %1186 = vmatprep.subr.mxu0 0.0
    %1187 = vmatpush1.msra.mxu0 0.0
    %1188 = vmatprep.subr.mxu0 0.0
    %1189 = vmatpush1.msra.mxu0 0.0
    %1190 = vmatprep.subr.mxu0 0.0
    %1191 = vmatpush1.msra.mxu0 0.0
    %1192 = vmatprep.subr.mxu0 0.0
    %1193 = vmatpush1.msra.mxu0 0.0
    %1194 = vmatprep.subr.mxu0 0.0
    %1195 = vmatpush1.msra.mxu0 0.0
    %1196 = vmatprep.subr.mxu0 0.0
    %1197 = vmatpush1.msra.mxu0 0.0
    %1198 = vmatprep.mubr.f32.mxu0 0.0
    %1199 = vmatmul.mubr.f32.gmra.mrb[0].mxu0 %v1132
    %v1200 = vpop.f32.mrb[0].mxu0
    %v1201 = vadd.f32 0.0, %v1200
    %v1202 = vpop.f32.mrb[0].mxu0
    %1203 = vdwg.mxu0
    %v1204 = vadd.f32 %v1122, %v1201
    %vm1205 = vcmask 516096
    %1206 = vst.msk [vmem:[#allocation4] sm:$0x1] %vm1205, %v1204
    %s1207 = scalar_lea.vmem %s0, 16
    %v1208 = vld [vmem:[%s1207] sm:$0xff]
    %v1209 = vld [vmem:[%s1207 + $0x8] sm:$0xff]
    %1210 = vst.msk [vmem:[#allocation2 + $0x1] sm:$0xff] %vm53, %v1208
    %1211 = vst.msk [vmem:[#allocation2 + $0x9] sm:$0xff] %vm53, %v1209
    %v1212 = vld [vmem:[#allocation2] sm:$0xff]
    %v1213 = vld [vmem:[#allocation2 + $0x8] sm:$0xff]
    %v1214 = vld [vmem:[%s1] sm:$0xff]
    %v1215 = vld [vmem:[%s1 + $0x8] sm:$0x1f]
    %v1216 = vld [vmem:[#allocation2 + $0x1] sm:$0xff]
    %v1217 = vld [vmem:[#allocation2 + $0x9] sm:$0xff]
    %v1218 = vld [vmem:[%s62] sm:$0xff]
    %v1219 = vld [vmem:[%s62 + $0x8] sm:$0x1f]
    %v1221 = vsel %vm53, %v1216, 0
    %v1224 = vsel %vm53, %v1217, 0
    %v1227 = vsel %vm71, %v1219, 0
    %1229 = vmatprep.subr.mxu0 0.0
    %1230 = vmatpush1.msra.mxu0 %v1218
    %1231 = vmatprep.subr.mxu0 0.0
    %1232 = vmatpush1.msra.mxu0 %v1227
    %1233 = vmatprep.subr.mxu0 0.0
    %1234 = vmatpush1.msra.mxu0 0.0
    %1235 = vmatprep.subr.mxu0 0.0
    %1236 = vmatpush1.msra.mxu0 0.0
    %1237 = vmatprep.subr.mxu0 0.0
    %1238 = vmatpush1.msra.mxu0 0.0
    %1239 = vmatprep.subr.mxu0 0.0
    %1240 = vmatpush1.msra.mxu0 0.0
    %1241 = vmatprep.subr.mxu0 0.0
    %1242 = vmatpush1.msra.mxu0 0.0
    %1243 = vmatprep.subr.mxu0 0.0
    %1244 = vmatpush1.msra.mxu0 0.0
    %1245 = vmatprep.subr.mxu0 0.0
    %1246 = vmatpush1.msra.mxu0 0.0
    %1247 = vmatprep.subr.mxu0 0.0
    %1248 = vmatpush1.msra.mxu0 0.0
    %1249 = vmatprep.subr.mxu0 0.0
    %1250 = vmatpush1.msra.mxu0 0.0
    %1251 = vmatprep.subr.mxu0 0.0
    %1252 = vmatpush1.msra.mxu0 0.0
    %1253 = vmatprep.subr.mxu0 0.0
    %1254 = vmatpush1.msra.mxu0 0.0
    %1255 = vmatprep.subr.mxu0 0.0
    %1256 = vmatpush1.msra.mxu0 0.0
    %1257 = vmatprep.subr.mxu0 0.0
    %1258 = vmatpush1.msra.mxu0 0.0
    %1259 = vmatprep.subr.mxu0 0.0
    %1260 = vmatpush1.msra.mxu0 0.0
    %1261 = vmatprep.subr.mxu0 0.0
    %1262 = vmatpush1.msra.mxu0 0.0
    %1263 = vmatprep.subr.mxu0 0.0
    %1264 = vmatpush1.msra.mxu0 0.0
    %1265 = vmatprep.subr.mxu0 0.0
    %1266 = vmatpush1.msra.mxu0 0.0
    %1267 = vmatprep.subr.mxu0 0.0
    %1268 = vmatpush1.msra.mxu0 0.0
    %1269 = vmatprep.subr.mxu0 0.0
    %1270 = vmatpush1.msra.mxu0 0.0
    %1271 = vmatprep.subr.mxu0 0.0
    %1272 = vmatpush1.msra.mxu0 0.0
    %1273 = vmatprep.subr.mxu0 0.0
    %1274 = vmatpush1.msra.mxu0 0.0
    %1275 = vmatprep.subr.mxu0 0.0
    %1276 = vmatpush1.msra.mxu0 0.0
    %1277 = vmatprep.subr.mxu0 0.0
    %1278 = vmatpush1.msra.mxu0 0.0
    %1279 = vmatprep.subr.mxu0 0.0
    %1280 = vmatpush1.msra.mxu0 0.0
    %1281 = vmatprep.subr.mxu0 0.0
    %1282 = vmatpush1.msra.mxu0 0.0
    %1283 = vmatprep.subr.mxu0 0.0
    %1284 = vmatpush1.msra.mxu0 0.0
    %1285 = vmatprep.subr.mxu0 0.0
    %1286 = vmatpush1.msra.mxu0 0.0
    %1287 = vmatprep.subr.mxu0 0.0
    %1288 = vmatpush1.msra.mxu0 0.0
    %1289 = vmatprep.subr.mxu0 0.0
    %1290 = vmatpush1.msra.mxu0 0.0
    %1291 = vmatprep.subr.mxu0 0.0
    %1292 = vmatpush1.msra.mxu0 0.0
    %1293 = vmatprep.mubr.f32.mxu0 0.0
    %1294 = vmatmul.mubr.f32.gmra.mrb[0].mxu0 %v1221
    %v1295 = vpop.f32.mrb[0].mxu0
    %v1296 = vadd.f32 0.0, %v1295
    %v1297 = vpop.f32.mrb[0].mxu0
    %1298 = vmatprep.mubr.f32.mxu0 0.0
    %1299 = vmatmul.mubr.f32.gmra.mrb[0].mxu0 %v1224
    %v1300 = vpop.f32.mrb[0].mxu0
    %v1301 = vadd.f32 0.0, %v1300
    %v1302 = vpop.f32.mrb[0].mxu0
    %1303 = vdwg.mxu0
    %v1305 = vsel %vm53, %v1212, 0
    %v1308 = vsel %vm53, %v1213, 0
    %v1311 = vsel %vm71, %v1215, 0
    %1313 = vmatprep.subr.mxu0 0.0
    %1314 = vmatpush1.msra.mxu0 %v1214
    %1315 = vmatprep.subr.mxu0 0.0
    %1316 = vmatpush1.msra.mxu0 %v1311
    %1317 = vmatprep.subr.mxu0 0.0
    %1318 = vmatpush1.msra.mxu0 0.0
    %1319 = vmatprep.subr.mxu0 0.0
    %1320 = vmatpush1.msra.mxu0 0.0
    %1321 = vmatprep.subr.mxu0 0.0
    %1322 = vmatpush1.msra.mxu0 0.0
    %1323 = vmatprep.subr.mxu0 0.0
    %1324 = vmatpush1.msra.mxu0 0.0
    %1325 = vmatprep.subr.mxu0 0.0
    %1326 = vmatpush1.msra.mxu0 0.0
    %1327 = vmatprep.subr.mxu0 0.0
    %1328 = vmatpush1.msra.mxu0 0.0
    %1329 = vmatprep.subr.mxu0 0.0
    %1330 = vmatpush1.msra.mxu0 0.0
    %1331 = vmatprep.subr.mxu0 0.0
    %1332 = vmatpush1.msra.mxu0 0.0
    %1333 = vmatprep.subr.mxu0 0.0
    %1334 = vmatpush1.msra.mxu0 0.0
    %1335 = vmatprep.subr.mxu0 0.0
    %1336 = vmatpush1.msra.mxu0 0.0
    %1337 = vmatprep.subr.mxu0 0.0
    %1338 = vmatpush1.msra.mxu0 0.0
    %1339 = vmatprep.subr.mxu0 0.0
    %1340 = vmatpush1.msra.mxu0 0.0
    %1341 = vmatprep.subr.mxu0 0.0
    %1342 = vmatpush1.msra.mxu0 0.0
    %1343 = vmatprep.subr.mxu0 0.0
    %1344 = vmatpush1.msra.mxu0 0.0
    %1345 = vmatprep.subr.mxu0 0.0
    %1346 = vmatpush1.msra.mxu0 0.0
    %1347 = vmatprep.subr.mxu0 0.0
    %1348 = vmatpush1.msra.mxu0 0.0
    %1349 = vmatprep.subr.mxu0 0.0
    %1350 = vmatpush1.msra.mxu0 0.0
    %1351 = vmatprep.subr.mxu0 0.0
    %1352 = vmatpush1.msra.mxu0 0.0
    %1353 = vmatprep.subr.mxu0 0.0
    %1354 = vmatpush1.msra.mxu0 0.0
    %1355 = vmatprep.subr.mxu0 0.0
    %1356 = vmatpush1.msra.mxu0 0.0
    %1357 = vmatprep.subr.mxu0 0.0
    %1358 = vmatpush1.msra.mxu0 0.0
    %1359 = vmatprep.subr.mxu0 0.0
    %1360 = vmatpush1.msra.mxu0 0.0
    %1361 = vmatprep.subr.mxu0 0.0
    %1362 = vmatpush1.msra.mxu0 0.0
    %1363 = vmatprep.subr.mxu0 0.0
    %1364 = vmatpush1.msra.mxu0 0.0
    %1365 = vmatprep.subr.mxu0 0.0
    %1366 = vmatpush1.msra.mxu0 0.0
    %1367 = vmatprep.subr.mxu0 0.0
    %1368 = vmatpush1.msra.mxu0 0.0
    %1369 = vmatprep.subr.mxu0 0.0
    %1370 = vmatpush1.msra.mxu0 0.0
    %1371 = vmatprep.subr.mxu0 0.0
    %1372 = vmatpush1.msra.mxu0 0.0
    %1373 = vmatprep.subr.mxu0 0.0
    %1374 = vmatpush1.msra.mxu0 0.0
    %1375 = vmatprep.subr.mxu0 0.0
    %1376 = vmatpush1.msra.mxu0 0.0
    %1377 = vmatprep.mubr.f32.mxu0 0.0
    %1378 = vmatmul.mubr.f32.gmra.mrb[0].mxu0 %v1305
    %v1379 = vpop.f32.mrb[0].mxu0
    %v1380 = vadd.f32 %v1296, %v1379
    %v1381 = vpop.f32.mrb[0].mxu0
    %1382 = vmatprep.mubr.f32.mxu0 0.0
    %1383 = vmatmul.mubr.f32.gmra.mrb[0].mxu0 %v1308
    %v1384 = vpop.f32.mrb[0].mxu0
    %v1385 = vadd.f32 %v1301, %v1384
    %v1386 = vpop.f32.mrb[0].mxu0
    %1387 = vdwg.mxu0
    %v1388 = vld [vmem:[#allocation2 + $0x2] sm:$0xff]
    %v1389 = vld [vmem:[#allocation2 + $0xa] sm:$0xff]
    %v1390 = vld [vmem:[%s236] sm:$0xff]
    %v1391 = vld [vmem:[%s236 + $0x8] sm:$0x1f]
    %v1393 = vsel %vm53, %v1388, 0
    %v1396 = vsel %vm53, %v1389, 0
    %v1399 = vsel %vm71, %v1391, 0
    %1401 = vmatprep.subr.mxu0 0.0
    %1402 = vmatpush1.msra.mxu0 %v1390
    %1403 = vmatprep.subr.mxu0 0.0
    %1404 = vmatpush1.msra.mxu0 %v1399
    %1405 = vmatprep.subr.mxu0 0.0
    %1406 = vmatpush1.msra.mxu0 0.0
    %1407 = vmatprep.subr.mxu0 0.0
    %1408 = vmatpush1.msra.mxu0 0.0
    %1409 = vmatprep.subr.mxu0 0.0
    %1410 = vmatpush1.msra.mxu0 0.0
    %1411 = vmatprep.subr.mxu0 0.0
    %1412 = vmatpush1.msra.mxu0 0.0
    %1413 = vmatprep.subr.mxu0 0.0
    %1414 = vmatpush1.msra.mxu0 0.0
    %1415 = vmatprep.subr.mxu0 0.0
    %1416 = vmatpush1.msra.mxu0 0.0
    %1417 = vmatprep.subr.mxu0 0.0
    %1418 = vmatpush1.msra.mxu0 0.0
    %1419 = vmatprep.subr.mxu0 0.0
    %1420 = vmatpush1.msra.mxu0 0.0
    %1421 = vmatprep.subr.mxu0 0.0
    %1422 = vmatpush1.msra.mxu0 0.0
    %1423 = vmatprep.subr.mxu0 0.0
    %1424 = vmatpush1.msra.mxu0 0.0
    %1425 = vmatprep.subr.mxu0 0.0
    %1426 = vmatpush1.msra.mxu0 0.0
    %1427 = vmatprep.subr.mxu0 0.0
    %1428 = vmatpush1.msra.mxu0 0.0
    %1429 = vmatprep.subr.mxu0 0.0
    %1430 = vmatpush1.msra.mxu0 0.0
    %1431 = vmatprep.subr.mxu0 0.0
    %1432 = vmatpush1.msra.mxu0 0.0
    %1433 = vmatprep.subr.mxu0 0.0
    %1434 = vmatpush1.msra.mxu0 0.0
    %1435 = vmatprep.subr.mxu0 0.0
    %1436 = vmatpush1.msra.mxu0 0.0
    %1437 = vmatprep.subr.mxu0 0.0
    %1438 = vmatpush1.msra.mxu0 0.0
    %1439 = vmatprep.subr.mxu0 0.0
    %1440 = vmatpush1.msra.mxu0 0.0
    %1441 = vmatprep.subr.mxu0 0.0
    %1442 = vmatpush1.msra.mxu0 0.0
    %1443 = vmatprep.subr.mxu0 0.0
    %1444 = vmatpush1.msra.mxu0 0.0
    %1445 = vmatprep.subr.mxu0 0.0
    %1446 = vmatpush1.msra.mxu0 0.0
    %1447 = vmatprep.subr.mxu0 0.0
    %1448 = vmatpush1.msra.mxu0 0.0
    %1449 = vmatprep.subr.mxu0 0.0
    %1450 = vmatpush1.msra.mxu0 0.0
    %1451 = vmatprep.subr.mxu0 0.0
    %1452 = vmatpush1.msra.mxu0 0.0
    %1453 = vmatprep.subr.mxu0 0.0
    %1454 = vmatpush1.msra.mxu0 0.0
    %1455 = vmatprep.subr.mxu0 0.0
    %1456 = vmatpush1.msra.mxu0 0.0
    %1457 = vmatprep.subr.mxu0 0.0
    %1458 = vmatpush1.msra.mxu0 0.0
    %1459 = vmatprep.subr.mxu0 0.0
    %1460 = vmatpush1.msra.mxu0 0.0
    %1461 = vmatprep.subr.mxu0 0.0
    %1462 = vmatpush1.msra.mxu0 0.0
    %1463 = vmatprep.subr.mxu0 0.0
    %1464 = vmatpush1.msra.mxu0 0.0
    %1465 = vmatprep.mubr.f32.mxu0 0.0
    %1466 = vmatmul.mubr.f32.gmra.mrb[0].mxu0 %v1393
    %v1467 = vpop.f32.mrb[0].mxu0
    %v1468 = vadd.f32 0.0, %v1467
    %v1469 = vpop.f32.mrb[0].mxu0
    %1470 = vmatprep.mubr.f32.mxu0 0.0
    %1471 = vmatmul.mubr.f32.gmra.mrb[0].mxu0 %v1396
    %v1472 = vpop.f32.mrb[0].mxu0
    %v1473 = vadd.f32 0.0, %v1472
    %v1474 = vpop.f32.mrb[0].mxu0
    %1475 = vdwg.mxu0
    %v1476 = vadd.f32 %v1380, %v1468
    %v1477 = vadd.f32 %v1385, %v1473
    %v1478 = vld [vmem:[%s2] sm:$0x1]
    %v1480 = vlaneseq
    %v1481 = vshrl.u32 %v1480, 7
    %v1482 = vsub.s32 0, %v1481
    %v1483 = vrot.slane %v1478, %v1482
    %v1485 = vadd.f32 %v1476, %v1483
    %v1486 = vadd.f32 %v1477, %v1483
    %v1487 = vmax.f32 %v1485, 0.0
    %v1488 = vmax.f32 %v1486, 0.0
    %1489 = vmatprep.subr.mxu0 0.0
    %1490 = vmatpush1.msra.mxu0 %v1487
    %1491 = vmatprep.subr.mxu0 0.0
    %1492 = vmatpush1.msra.mxu0 %v1488
    %1493 = vmatprep.subr.mxu0 0.0
    %1494 = vmatpush1.msra.mxu0 0.0
    %1495 = vmatprep.subr.mxu0 0.0
    %1496 = vmatpush1.msra.mxu0 0.0
    %1497 = vmatprep.subr.mxu0 0.0
    %1498 = vmatpush1.msra.mxu0 0.0
    %1499 = vmatprep.subr.mxu0 0.0
    %1500 = vmatpush1.msra.mxu0 0.0
    %1501 = vmatprep.subr.mxu0 0.0
    %1502 = vmatpush1.msra.mxu0 0.0
    %1503 = vmatprep.subr.mxu0 0.0
    %1504 = vmatpush1.msra.mxu0 0.0
    %1505 = vmatprep.subr.mxu0 0.0
    %1506 = vmatpush1.msra.mxu0 0.0
    %1507 = vmatprep.subr.mxu0 0.0
    %1508 = vmatpush1.msra.mxu0 0.0
    %1509 = vmatprep.subr.mxu0 0.0
    %1510 = vmatpush1.msra.mxu0 0.0
    %1511 = vmatprep.subr.mxu0 0.0
    %1512 = vmatpush1.msra.mxu0 0.0
    %1513 = vmatprep.subr.mxu0 0.0
    %1514 = vmatpush1.msra.mxu0 0.0
    %1515 = vmatprep.subr.mxu0 0.0
    %1516 = vmatpush1.msra.mxu0 0.0
    %1517 = vmatprep.subr.mxu0 0.0
    %1518 = vmatpush1.msra.mxu0 0.0
    %1519 = vmatprep.subr.mxu0 0.0
    %1520 = vmatpush1.msra.mxu0 0.0
    %1521 = vmatprep.subr.mxu0 0.0
    %1522 = vmatpush1.msra.mxu0 0.0
    %1523 = vmatprep.subr.mxu0 0.0
    %1524 = vmatpush1.msra.mxu0 0.0
    %1525 = vmatprep.subr.mxu0 0.0
    %1526 = vmatpush1.msra.mxu0 0.0
    %1527 = vmatprep.subr.mxu0 0.0
    %1528 = vmatpush1.msra.mxu0 0.0
    %1529 = vmatprep.subr.mxu0 0.0
    %1530 = vmatpush1.msra.mxu0 0.0
    %1531 = vmatprep.subr.mxu0 0.0
    %1532 = vmatpush1.msra.mxu0 0.0
    %1533 = vmatprep.subr.mxu0 0.0
    %1534 = vmatpush1.msra.mxu0 0.0
    %1535 = vmatprep.subr.mxu0 0.0
    %1536 = vmatpush1.msra.mxu0 0.0
    %1537 = vmatprep.subr.mxu0 0.0
    %1538 = vmatpush1.msra.mxu0 0.0
    %1539 = vmatprep.subr.mxu0 0.0
    %1540 = vmatpush1.msra.mxu0 0.0
    %1541 = vmatprep.subr.mxu0 0.0
    %1542 = vmatpush1.msra.mxu0 0.0
    %1543 = vmatprep.subr.mxu0 0.0
    %1544 = vmatpush1.msra.mxu0 0.0
    %1545 = vmatprep.subr.mxu0 0.0
    %1546 = vmatpush1.msra.mxu0 0.0
    %1547 = vmatprep.subr.mxu0 0.0
    %1548 = vmatpush1.msra.mxu0 0.0
    %1549 = vmatprep.subr.mxu0 0.0
    %1550 = vmatpush1.msra.mxu0 0.0
    %1551 = vmatprep.subr.mxu0 0.0
    %1552 = vmatpush1.msra.mxu0 0.0
    %1553 = vmatprep.mubr.f32.mxu0 0.0
    %1554 = vmatmul.mubr.f32.gmra.mrb[0].mxu0 %v338
    %v1555 = vpop.f32.mrb[0].mxu0
    %v1556 = vadd.f32 0.0, %v1555
    %v1557 = vpop.f32.mrb[0].mxu0
    %1558 = vdwg.mxu0
    %1559 = vmatprep.subr.mxu0 0.0
    %1560 = vmatpush1.msra.mxu0 %v1487
    %1561 = vmatprep.subr.mxu0 0.0
    %1562 = vmatpush1.msra.mxu0 %v1488
    %1563 = vmatprep.subr.mxu0 0.0
    %1564 = vmatpush1.msra.mxu0 0.0
    %1565 = vmatprep.subr.mxu0 0.0
    %1566 = vmatpush1.msra.mxu0 0.0
    %1567 = vmatprep.subr.mxu0 0.0
    %1568 = vmatpush1.msra.mxu0 0.0
    %1569 = vmatprep.subr.mxu0 0.0
    %1570 = vmatpush1.msra.mxu0 0.0
    %1571 = vmatprep.subr.mxu0 0.0
    %1572 = vmatpush1.msra.mxu0 0.0
    %1573 = vmatprep.subr.mxu0 0.0
    %1574 = vmatpush1.msra.mxu0 0.0
    %1575 = vmatprep.subr.mxu0 0.0
    %1576 = vmatpush1.msra.mxu0 0.0
    %1577 = vmatprep.subr.mxu0 0.0
    %1578 = vmatpush1.msra.mxu0 0.0
    %1579 = vmatprep.subr.mxu0 0.0
    %1580 = vmatpush1.msra.mxu0 0.0
    %1581 = vmatprep.subr.mxu0 0.0
    %1582 = vmatpush1.msra.mxu0 0.0
    %1583 = vmatprep.subr.mxu0 0.0
    %1584 = vmatpush1.msra.mxu0 0.0
    %1585 = vmatprep.subr.mxu0 0.0
    %1586 = vmatpush1.msra.mxu0 0.0
    %1587 = vmatprep.subr.mxu0 0.0
    %1588 = vmatpush1.msra.mxu0 0.0
    %1589 = vmatprep.subr.mxu0 0.0
    %1590 = vmatpush1.msra.mxu0 0.0
    %1591 = vmatprep.subr.mxu0 0.0
    %1592 = vmatpush1.msra.mxu0 0.0
    %1593 = vmatprep.subr.mxu0 0.0
    %1594 = vmatpush1.msra.mxu0 0.0
    %1595 = vmatprep.subr.mxu0 0.0
    %1596 = vmatpush1.msra.mxu0 0.0
    %1597 = vmatprep.subr.mxu0 0.0
    %1598 = vmatpush1.msra.mxu0 0.0
    %1599 = vmatprep.subr.mxu0 0.0
    %1600 = vmatpush1.msra.mxu0 0.0
    %1601 = vmatprep.subr.mxu0 0.0
    %1602 = vmatpush1.msra.mxu0 0.0
    %1603 = vmatprep.subr.mxu0 0.0
    %1604 = vmatpush1.msra.mxu0 0.0
    %1605 = vmatprep.subr.mxu0 0.0
    %1606 = vmatpush1.msra.mxu0 0.0
    %1607 = vmatprep.subr.mxu0 0.0
    %1608 = vmatpush1.msra.mxu0 0.0
    %1609 = vmatprep.subr.mxu0 0.0
    %1610 = vmatpush1.msra.mxu0 0.0
    %1611 = vmatprep.subr.mxu0 0.0
    %1612 = vmatpush1.msra.mxu0 0.0
    %1613 = vmatprep.subr.mxu0 0.0
    %1614 = vmatpush1.msra.mxu0 0.0
    %1615 = vmatprep.subr.mxu0 0.0
    %1616 = vmatpush1.msra.mxu0 0.0
    %1617 = vmatprep.subr.mxu0 0.0
    %1618 = vmatpush1.msra.mxu0 0.0
    %1619 = vmatprep.subr.mxu0 0.0
    %1620 = vmatpush1.msra.mxu0 0.0
    %1621 = vmatprep.subr.mxu0 0.0
    %1622 = vmatpush1.msra.mxu0 0.0
    %1623 = vmatprep.mubr.f32.mxu0 0.0
    %1624 = vmatmul.mubr.f32.gmra.mrb[0].mxu0 %v411
    %v1625 = vpop.f32.mrb[0].mxu0
    %v1626 = vadd.f32 0.0, %v1625
    %v1627 = vpop.f32.mrb[0].mxu0
    %1628 = vdwg.mxu0
    %v1629 = vmax.f32 %v1556, %v1626
    %1630 = vst.msk [vmem:[#allocation3 + $0x1] sm:$0xff] %vm484, %v1629
    %v1631 = vld [vmem:[#allocation3] sm:$0xff]
    %v1632 = vld [vmem:[%s3] sm:$0xff]
    %v1633 = vld [vmem:[%s3 + $0x8] sm:$0xff]
    %v1634 = vld [vmem:[%s3 + $0x10] sm:$0xff]
    %v1635 = vld [vmem:[%s3 + $0x18] sm:$0xff]
    %v1636 = vld [vmem:[#allocation3 + $0x1] sm:$0xff]
    %v1637 = vld [vmem:[%s492] sm:$0xff]
    %v1638 = vld [vmem:[%s492 + $0x8] sm:$0xff]
    %v1639 = vld [vmem:[%s492 + $0x10] sm:$0xff]
    %v1640 = vld [vmem:[%s492 + $0x18] sm:$0xff]
    %v1642 = vsel %vm484, %v1636, 0
    %1644 = vmatprep.subr.mxu0 0.0
    %1645 = vmatpush1.msra.mxu0 %v1637
    %1646 = vmatprep.subr.mxu0 0.0
    %1647 = vmatpush1.msra.mxu0 %v1638
    %1648 = vmatprep.subr.mxu0 0.0
    %1649 = vmatpush1.msra.mxu0 %v1639
    %1650 = vmatprep.subr.mxu0 0.0
    %1651 = vmatpush1.msra.mxu0 %v1640
    %1652 = vmatprep.subr.mxu0 0.0
    %1653 = vmatpush1.msra.mxu0 0.0
    %1654 = vmatprep.subr.mxu0 0.0
    %1655 = vmatpush1.msra.mxu0 0.0
    %1656 = vmatprep.subr.mxu0 0.0
    %1657 = vmatpush1.msra.mxu0 0.0
    %1658 = vmatprep.subr.mxu0 0.0
    %1659 = vmatpush1.msra.mxu0 0.0
    %1660 = vmatprep.subr.mxu0 0.0
    %1661 = vmatpush1.msra.mxu0 0.0
    %1662 = vmatprep.subr.mxu0 0.0
    %1663 = vmatpush1.msra.mxu0 0.0
    %1664 = vmatprep.subr.mxu0 0.0
    %1665 = vmatpush1.msra.mxu0 0.0
    %1666 = vmatprep.subr.mxu0 0.0
    %1667 = vmatpush1.msra.mxu0 0.0
    %1668 = vmatprep.subr.mxu0 0.0
    %1669 = vmatpush1.msra.mxu0 0.0
    %1670 = vmatprep.subr.mxu0 0.0
    %1671 = vmatpush1.msra.mxu0 0.0
    %1672 = vmatprep.subr.mxu0 0.0
    %1673 = vmatpush1.msra.mxu0 0.0
    %1674 = vmatprep.subr.mxu0 0.0
    %1675 = vmatpush1.msra.mxu0 0.0
    %1676 = vmatprep.subr.mxu0 0.0
    %1677 = vmatpush1.msra.mxu0 0.0
    %1678 = vmatprep.subr.mxu0 0.0
    %1679 = vmatpush1.msra.mxu0 0.0
    %1680 = vmatprep.subr.mxu0 0.0
    %1681 = vmatpush1.msra.mxu0 0.0
    %1682 = vmatprep.subr.mxu0 0.0
    %1683 = vmatpush1.msra.mxu0 0.0
    %1684 = vmatprep.subr.mxu0 0.0
    %1685 = vmatpush1.msra.mxu0 0.0
    %1686 = vmatprep.subr.mxu0 0.0
    %1687 = vmatpush1.msra.mxu0 0.0
    %1688 = vmatprep.subr.mxu0 0.0
    %1689 = vmatpush1.msra.mxu0 0.0
    %1690 = vmatprep.subr.mxu0 0.0
    %1691 = vmatpush1.msra.mxu0 0.0
    %1692 = vmatprep.subr.mxu0 0.0
    %1693 = vmatpush1.msra.mxu0 0.0
    %1694 = vmatprep.subr.mxu0 0.0
    %1695 = vmatpush1.msra.mxu0 0.0
    %1696 = vmatprep.subr.mxu0 0.0
    %1697 = vmatpush1.msra.mxu0 0.0
    %1698 = vmatprep.subr.mxu0 0.0
    %1699 = vmatpush1.msra.mxu0 0.0
    %1700 = vmatprep.subr.mxu0 0.0
    %1701 = vmatpush1.msra.mxu0 0.0
    %1702 = vmatprep.subr.mxu0 0.0
    %1703 = vmatpush1.msra.mxu0 0.0
    %1704 = vmatprep.subr.mxu0 0.0
    %1705 = vmatpush1.msra.mxu0 0.0
    %1706 = vmatprep.subr.mxu0 0.0
    %1707 = vmatpush1.msra.mxu0 0.0
    %1708 = vmatprep.mubr.f32.mxu0 0.0
    %1709 = vmatmul.mubr.f32.gmra.mrb[0].mxu0 %v1642
    %v1710 = vpop.f32.mrb[0].mxu0
    %v1711 = vadd.f32 0.0, %v1710
    %v1712 = vpop.f32.mrb[0].mxu0
    %1713 = vdwg.mxu0
    %v1715 = vsel %vm484, %v1631, 0
    %1717 = vmatprep.subr.mxu0 0.0
    %1718 = vmatpush1.msra.mxu0 %v1632
    %1719 = vmatprep.subr.mxu0 0.0
    %1720 = vmatpush1.msra.mxu0 %v1633
    %1721 = vmatprep.subr.mxu0 0.0
    %1722 = vmatpush1.msra.mxu0 %v1634
    %1723 = vmatprep.subr.mxu0 0.0
    %1724 = vmatpush1.msra.mxu0 %v1635
    %1725 = vmatprep.subr.mxu0 0.0
    %1726 = vmatpush1.msra.mxu0 0.0
    %1727 = vmatprep.subr.mxu0 0.0
    %1728 = vmatpush1.msra.mxu0 0.0
    %1729 = vmatprep.subr.mxu0 0.0
    %1730 = vmatpush1.msra.mxu0 0.0
    %1731 = vmatprep.subr.mxu0 0.0
    %1732 = vmatpush1.msra.mxu0 0.0
    %1733 = vmatprep.subr.mxu0 0.0
    %1734 = vmatpush1.msra.mxu0 0.0
    %1735 = vmatprep.subr.mxu0 0.0
    %1736 = vmatpush1.msra.mxu0 0.0
    %1737 = vmatprep.subr.mxu0 0.0
    %1738 = vmatpush1.msra.mxu0 0.0
    %1739 = vmatprep.subr.mxu0 0.0
    %1740 = vmatpush1.msra.mxu0 0.0
    %1741 = vmatprep.subr.mxu0 0.0
    %1742 = vmatpush1.msra.mxu0 0.0
    %1743 = vmatprep.subr.mxu0 0.0
    %1744 = vmatpush1.msra.mxu0 0.0
    %1745 = vmatprep.subr.mxu0 0.0
    %1746 = vmatpush1.msra.mxu0 0.0
    %1747 = vmatprep.subr.mxu0 0.0
    %1748 = vmatpush1.msra.mxu0 0.0
    %1749 = vmatprep.subr.mxu0 0.0
    %1750 = vmatpush1.msra.mxu0 0.0
    %1751 = vmatprep.subr.mxu0 0.0
    %1752 = vmatpush1.msra.mxu0 0.0
    %1753 = vmatprep.subr.mxu0 0.0
    %1754 = vmatpush1.msra.mxu0 0.0
    %1755 = vmatprep.subr.mxu0 0.0
    %1756 = vmatpush1.msra.mxu0 0.0
    %1757 = vmatprep.subr.mxu0 0.0
    %1758 = vmatpush1.msra.mxu0 0.0
    %1759 = vmatprep.subr.mxu0 0.0
    %1760 = vmatpush1.msra.mxu0 0.0
    %1761 = vmatprep.subr.mxu0 0.0
    %1762 = vmatpush1.msra.mxu0 0.0
    %1763 = vmatprep.subr.mxu0 0.0
    %1764 = vmatpush1.msra.mxu0 0.0
    %1765 = vmatprep.subr.mxu0 0.0
    %1766 = vmatpush1.msra.mxu0 0.0
    %1767 = vmatprep.subr.mxu0 0.0
    %1768 = vmatpush1.msra.mxu0 0.0
    %1769 = vmatprep.subr.mxu0 0.0
    %1770 = vmatpush1.msra.mxu0 0.0
    %1771 = vmatprep.subr.mxu0 0.0
    %1772 = vmatpush1.msra.mxu0 0.0
    %1773 = vmatprep.subr.mxu0 0.0
    %1774 = vmatpush1.msra.mxu0 0.0
    %1775 = vmatprep.subr.mxu0 0.0
    %1776 = vmatpush1.msra.mxu0 0.0
    %1777 = vmatprep.subr.mxu0 0.0
    %1778 = vmatpush1.msra.mxu0 0.0
    %1779 = vmatprep.subr.mxu0 0.0
    %1780 = vmatpush1.msra.mxu0 0.0
    %1781 = vmatprep.mubr.f32.mxu0 0.0
    %1782 = vmatmul.mubr.f32.gmra.mrb[0].mxu0 %v1715
    %v1783 = vpop.f32.mrb[0].mxu0
    %v1784 = vadd.f32 %v1711, %v1783
    %v1785 = vpop.f32.mrb[0].mxu0
    %1786 = vdwg.mxu0
    %v1787 = vld [vmem:[#allocation3 + $0x2] sm:$0xff]
    %v1788 = vld [vmem:[%s644] sm:$0xff]
    %v1789 = vld [vmem:[%s644 + $0x8] sm:$0xff]
    %v1790 = vld [vmem:[%s644 + $0x10] sm:$0xff]
    %v1791 = vld [vmem:[%s644 + $0x18] sm:$0xff]
    %v1793 = vsel %vm484, %v1787, 0
    %1795 = vmatprep.subr.mxu0 0.0
    %1796 = vmatpush1.msra.mxu0 %v1788
    %1797 = vmatprep.subr.mxu0 0.0
    %1798 = vmatpush1.msra.mxu0 %v1789
    %1799 = vmatprep.subr.mxu0 0.0
    %1800 = vmatpush1.msra.mxu0 %v1790
    %1801 = vmatprep.subr.mxu0 0.0
    %1802 = vmatpush1.msra.mxu0 %v1791
    %1803 = vmatprep.subr.mxu0 0.0
    %1804 = vmatpush1.msra.mxu0 0.0
    %1805 = vmatprep.subr.mxu0 0.0
    %1806 = vmatpush1.msra.mxu0 0.0
    %1807 = vmatprep.subr.mxu0 0.0
    %1808 = vmatpush1.msra.mxu0 0.0
    %1809 = vmatprep.subr.mxu0 0.0
    %1810 = vmatpush1.msra.mxu0 0.0
    %1811 = vmatprep.subr.mxu0 0.0
    %1812 = vmatpush1.msra.mxu0 0.0
    %1813 = vmatprep.subr.mxu0 0.0
    %1814 = vmatpush1.msra.mxu0 0.0
    %1815 = vmatprep.subr.mxu0 0.0
    %1816 = vmatpush1.msra.mxu0 0.0
    %1817 = vmatprep.subr.mxu0 0.0
    %1818 = vmatpush1.msra.mxu0 0.0
    %1819 = vmatprep.subr.mxu0 0.0
    %1820 = vmatpush1.msra.mxu0 0.0
    %1821 = vmatprep.subr.mxu0 0.0
    %1822 = vmatpush1.msra.mxu0 0.0
    %1823 = vmatprep.subr.mxu0 0.0
    %1824 = vmatpush1.msra.mxu0 0.0
    %1825 = vmatprep.subr.mxu0 0.0
    %1826 = vmatpush1.msra.mxu0 0.0
    %1827 = vmatprep.subr.mxu0 0.0
    %1828 = vmatpush1.msra.mxu0 0.0
    %1829 = vmatprep.subr.mxu0 0.0
    %1830 = vmatpush1.msra.mxu0 0.0
    %1831 = vmatprep.subr.mxu0 0.0
    %1832 = vmatpush1.msra.mxu0 0.0
    %1833 = vmatprep.subr.mxu0 0.0
    %1834 = vmatpush1.msra.mxu0 0.0
    %1835 = vmatprep.subr.mxu0 0.0
    %1836 = vmatpush1.msra.mxu0 0.0
    %1837 = vmatprep.subr.mxu0 0.0
    %1838 = vmatpush1.msra.mxu0 0.0
    %1839 = vmatprep.subr.mxu0 0.0
    %1840 = vmatpush1.msra.mxu0 0.0
    %1841 = vmatprep.subr.mxu0 0.0
    %1842 = vmatpush1.msra.mxu0 0.0
    %1843 = vmatprep.subr.mxu0 0.0
    %1844 = vmatpush1.msra.mxu0 0.0
    %1845 = vmatprep.subr.mxu0 0.0
    %1846 = vmatpush1.msra.mxu0 0.0
    %1847 = vmatprep.subr.mxu0 0.0
    %1848 = vmatpush1.msra.mxu0 0.0
    %1849 = vmatprep.subr.mxu0 0.0
    %1850 = vmatpush1.msra.mxu0 0.0
    %1851 = vmatprep.subr.mxu0 0.0
    %1852 = vmatpush1.msra.mxu0 0.0
    %1853 = vmatprep.subr.mxu0 0.0
    %1854 = vmatpush1.msra.mxu0 0.0
    %1855 = vmatprep.subr.mxu0 0.0
    %1856 = vmatpush1.msra.mxu0 0.0
    %1857 = vmatprep.subr.mxu0 0.0
    %1858 = vmatpush1.msra.mxu0 0.0
    %1859 = vmatprep.mubr.f32.mxu0 0.0
    %1860 = vmatmul.mubr.f32.gmra.mrb[0].mxu0 %v1793
    %v1861 = vpop.f32.mrb[0].mxu0
    %v1862 = vadd.f32 0.0, %v1861
    %v1863 = vpop.f32.mrb[0].mxu0
    %1864 = vdwg.mxu0
    %v1865 = vadd.f32 %v1784, %v1862
    %v1866 = vld [vmem:[%s4] sm:$0x1]
    %v1868 = vlaneseq
    %v1869 = vshrl.u32 %v1868, 7
    %v1870 = vsub.s32 0, %v1869
    %v1871 = vrot.slane %v1866, %v1870
    %v1873 = vadd.f32 %v1865, %v1871
    %v1874 = vmax.f32 %v1873, 0.0
    %1875 = vmatprep.subr.mxu0 0.0
    %1876 = vmatpush1.msra.mxu0 %v1874
    %1877 = vmatprep.subr.mxu0 0.0
    %1878 = vmatpush1.msra.mxu0 0.0
    %1879 = vmatprep.subr.mxu0 0.0
    %1880 = vmatpush1.msra.mxu0 0.0
    %1881 = vmatprep.subr.mxu0 0.0
    %1882 = vmatpush1.msra.mxu0 0.0
    %1883 = vmatprep.subr.mxu0 0.0
    %1884 = vmatpush1.msra.mxu0 0.0
    %1885 = vmatprep.subr.mxu0 0.0
    %1886 = vmatpush1.msra.mxu0 0.0
    %1887 = vmatprep.subr.mxu0 0.0
    %1888 = vmatpush1.msra.mxu0 0.0
    %1889 = vmatprep.subr.mxu0 0.0
    %1890 = vmatpush1.msra.mxu0 0.0
    %1891 = vmatprep.subr.mxu0 0.0
    %1892 = vmatpush1.msra.mxu0 0.0
    %1893 = vmatprep.subr.mxu0 0.0
    %1894 = vmatpush1.msra.mxu0 0.0
    %1895 = vmatprep.subr.mxu0 0.0
    %1896 = vmatpush1.msra.mxu0 0.0
    %1897 = vmatprep.subr.mxu0 0.0
    %1898 = vmatpush1.msra.mxu0 0.0
    %1899 = vmatprep.subr.mxu0 0.0
    %1900 = vmatpush1.msra.mxu0 0.0
    %1901 = vmatprep.subr.mxu0 0.0
    %1902 = vmatpush1.msra.mxu0 0.0
    %1903 = vmatprep.subr.mxu0 0.0
    %1904 = vmatpush1.msra.mxu0 0.0
    %1905 = vmatprep.subr.mxu0 0.0
    %1906 = vmatpush1.msra.mxu0 0.0
    %1907 = vmatprep.subr.mxu0 0.0
    %1908 = vmatpush1.msra.mxu0 0.0
    %1909 = vmatprep.subr.mxu0 0.0
    %1910 = vmatpush1.msra.mxu0 0.0
    %1911 = vmatprep.subr.mxu0 0.0
    %1912 = vmatpush1.msra.mxu0 0.0
    %1913 = vmatprep.subr.mxu0 0.0
    %1914 = vmatpush1.msra.mxu0 0.0
    %1915 = vmatprep.subr.mxu0 0.0
    %1916 = vmatpush1.msra.mxu0 0.0
    %1917 = vmatprep.subr.mxu0 0.0
    %1918 = vmatpush1.msra.mxu0 0.0
    %1919 = vmatprep.subr.mxu0 0.0
    %1920 = vmatpush1.msra.mxu0 0.0
    %1921 = vmatprep.subr.mxu0 0.0
    %1922 = vmatpush1.msra.mxu0 0.0
    %1923 = vmatprep.subr.mxu0 0.0
    %1924 = vmatpush1.msra.mxu0 0.0
    %1925 = vmatprep.subr.mxu0 0.0
    %1926 = vmatpush1.msra.mxu0 0.0
    %1927 = vmatprep.subr.mxu0 0.0
    %1928 = vmatpush1.msra.mxu0 0.0
    %1929 = vmatprep.subr.mxu0 0.0
    %1930 = vmatpush1.msra.mxu0 0.0
    %1931 = vmatprep.subr.mxu0 0.0
    %1932 = vmatpush1.msra.mxu0 0.0
    %1933 = vmatprep.subr.mxu0 0.0
    %1934 = vmatpush1.msra.mxu0 0.0
    %1935 = vmatprep.subr.mxu0 0.0
    %1936 = vmatpush1.msra.mxu0 0.0
    %1937 = vmatprep.subr.mxu0 0.0
    %1938 = vmatpush1.msra.mxu0 0.0
    %1939 = vmatprep.mubr.f32.mxu0 0.0
    %1940 = vmatmul.mubr.f32.gmra.mrb[0].mxu0 %v733
    %v1941 = vpop.f32.mrb[0].mxu0
    %v1942 = vadd.f32 0.0, %v1941
    %v1943 = vpop.f32.mrb[0].mxu0
    %1944 = vdwg.mxu0
    %1945 = vmatprep.subr.mxu0 0.0
    %1946 = vmatpush1.msra.mxu0 %v1874
    %1947 = vmatprep.subr.mxu0 0.0
    %1948 = vmatpush1.msra.mxu0 0.0
    %1949 = vmatprep.subr.mxu0 0.0
    %1950 = vmatpush1.msra.mxu0 0.0
    %1951 = vmatprep.subr.mxu0 0.0
    %1952 = vmatpush1.msra.mxu0 0.0
    %1953 = vmatprep.subr.mxu0 0.0
    %1954 = vmatpush1.msra.mxu0 0.0
    %1955 = vmatprep.subr.mxu0 0.0
    %1956 = vmatpush1.msra.mxu0 0.0
    %1957 = vmatprep.subr.mxu0 0.0
    %1958 = vmatpush1.msra.mxu0 0.0
    %1959 = vmatprep.subr.mxu0 0.0
    %1960 = vmatpush1.msra.mxu0 0.0
    %1961 = vmatprep.subr.mxu0 0.0
    %1962 = vmatpush1.msra.mxu0 0.0
    %1963 = vmatprep.subr.mxu0 0.0
    %1964 = vmatpush1.msra.mxu0 0.0
    %1965 = vmatprep.subr.mxu0 0.0
    %1966 = vmatpush1.msra.mxu0 0.0
    %1967 = vmatprep.subr.mxu0 0.0
    %1968 = vmatpush1.msra.mxu0 0.0
    %1969 = vmatprep.subr.mxu0 0.0
    %1970 = vmatpush1.msra.mxu0 0.0
    %1971 = vmatprep.subr.mxu0 0.0
    %1972 = vmatpush1.msra.mxu0 0.0
    %1973 = vmatprep.subr.mxu0 0.0
    %1974 = vmatpush1.msra.mxu0 0.0
    %1975 = vmatprep.subr.mxu0 0.0
    %1976 = vmatpush1.msra.mxu0 0.0
    %1977 = vmatprep.subr.mxu0 0.0
    %1978 = vmatpush1.msra.mxu0 0.0
    %1979 = vmatprep.subr.mxu0 0.0
    %1980 = vmatpush1.msra.mxu0 0.0
    %1981 = vmatprep.subr.mxu0 0.0
    %1982 = vmatpush1.msra.mxu0 0.0
    %1983 = vmatprep.subr.mxu0 0.0
    %1984 = vmatpush1.msra.mxu0 0.0
    %1985 = vmatprep.subr.mxu0 0.0
    %1986 = vmatpush1.msra.mxu0 0.0
    %1987 = vmatprep.subr.mxu0 0.0
    %1988 = vmatpush1.msra.mxu0 0.0
    %1989 = vmatprep.subr.mxu0 0.0
    %1990 = vmatpush1.msra.mxu0 0.0
    %1991 = vmatprep.subr.mxu0 0.0
    %1992 = vmatpush1.msra.mxu0 0.0
    %1993 = vmatprep.subr.mxu0 0.0
    %1994 = vmatpush1.msra.mxu0 0.0
    %1995 = vmatprep.subr.mxu0 0.0
    %1996 = vmatpush1.msra.mxu0 0.0
    %1997 = vmatprep.subr.mxu0 0.0
    %1998 = vmatpush1.msra.mxu0 0.0
    %1999 = vmatprep.subr.mxu0 0.0
    %2000 = vmatpush1.msra.mxu0 0.0
    %2001 = vmatprep.subr.mxu0 0.0
    %2002 = vmatpush1.msra.mxu0 0.0
    %2003 = vmatprep.subr.mxu0 0.0
    %2004 = vmatpush1.msra.mxu0 0.0
    %2005 = vmatprep.subr.mxu0 0.0
    %2006 = vmatpush1.msra.mxu0 0.0
    %2007 = vmatprep.subr.mxu0 0.0
    %2008 = vmatpush1.msra.mxu0 0.0
    %2009 = vmatprep.mubr.f32.mxu0 0.0
    %2010 = vmatmul.mubr.f32.gmra.mrb[0].mxu0 %v805
    %v2011 = vpop.f32.mrb[0].mxu0
    %v2012 = vadd.f32 0.0, %v2011
    %v2013 = vpop.f32.mrb[0].mxu0
    %2014 = vdwg.mxu0
    %v2015 = vmax.f32 %v1942, %v2012
    %v2016 = vld [vmem:[%s5] sm:$0xff]
    %v2017 = vld [vmem:[%s5 + $0x8] sm:$0xff]
    %v2018 = vld [vmem:[%s5 + $0x10] sm:$0xff]
    %v2019 = vld [vmem:[%s5 + $0x18] sm:$0xff]
    %v2020 = vld [vmem:[%s5 + $0x20] sm:$0xff]
    %v2021 = vld [vmem:[%s5 + $0x28] sm:$0xff]
    %v2022 = vld [vmem:[%s5 + $0x30] sm:$0xff]
    %v2023 = vld [vmem:[%s5 + $0x38] sm:$0xff]
    %v2024 = vld [vmem:[%s5 + $0x40] sm:$0xff]
    %v2025 = vld [vmem:[%s5 + $0x48] sm:$0xff]
    %v2026 = vld [vmem:[%s5 + $0x50] sm:$0xff]
    %v2027 = vld [vmem:[%s5 + $0x58] sm:$0xff]
    %v2028 = vld [vmem:[%s5 + $0x60] sm:$0xff]
    %v2029 = vld [vmem:[%s5 + $0x68] sm:$0xff]
    %v2030 = vld [vmem:[%s5 + $0x70] sm:$0xff]
    %v2031 = vld [vmem:[%s5 + $0x78] sm:$0xff]
    %v2033 = vrot.slane %v2015, 1
    %v2034 = vsel %vm896, %v2033, 0
    %2036 = vmatprep.subr.mxu0 0.0
    %2037 = vmatpush1.msra.mxu0 %v2024
    %2038 = vmatprep.subr.mxu0 0.0
    %2039 = vmatpush1.msra.mxu0 %v2025
    %2040 = vmatprep.subr.mxu0 0.0
    %2041 = vmatpush1.msra.mxu0 %v2026
    %2042 = vmatprep.subr.mxu0 0.0
    %2043 = vmatpush1.msra.mxu0 %v2027
    %2044 = vmatprep.subr.mxu0 0.0
    %2045 = vmatpush1.msra.mxu0 %v2028
    %2046 = vmatprep.subr.mxu0 0.0
    %2047 = vmatpush1.msra.mxu0 %v2029
    %2048 = vmatprep.subr.mxu0 0.0
    %2049 = vmatpush1.msra.mxu0 %v2030
    %2050 = vmatprep.subr.mxu0 0.0
    %2051 = vmatpush1.msra.mxu0 %v2031
    %2052 = vmatprep.subr.mxu0 0.0
    %2053 = vmatpush1.msra.mxu0 0.0
    %2054 = vmatprep.subr.mxu0 0.0
    %2055 = vmatpush1.msra.mxu0 0.0
    %2056 = vmatprep.subr.mxu0 0.0
    %2057 = vmatpush1.msra.mxu0 0.0
    %2058 = vmatprep.subr.mxu0 0.0
    %2059 = vmatpush1.msra.mxu0 0.0
    %2060 = vmatprep.subr.mxu0 0.0
    %2061 = vmatpush1.msra.mxu0 0.0
    %2062 = vmatprep.subr.mxu0 0.0
    %2063 = vmatpush1.msra.mxu0 0.0
    %2064 = vmatprep.subr.mxu0 0.0
    %2065 = vmatpush1.msra.mxu0 0.0
    %2066 = vmatprep.subr.mxu0 0.0
    %2067 = vmatpush1.msra.mxu0 0.0
    %2068 = vmatprep.subr.mxu0 0.0
    %2069 = vmatpush1.msra.mxu0 0.0
    %2070 = vmatprep.subr.mxu0 0.0
    %2071 = vmatpush1.msra.mxu0 0.0
    %2072 = vmatprep.subr.mxu0 0.0
    %2073 = vmatpush1.msra.mxu0 0.0
    %2074 = vmatprep.subr.mxu0 0.0
    %2075 = vmatpush1.msra.mxu0 0.0
    %2076 = vmatprep.subr.mxu0 0.0
    %2077 = vmatpush1.msra.mxu0 0.0
    %2078 = vmatprep.subr.mxu0 0.0
    %2079 = vmatpush1.msra.mxu0 0.0
    %2080 = vmatprep.subr.mxu0 0.0
    %2081 = vmatpush1.msra.mxu0 0.0
    %2082 = vmatprep.subr.mxu0 0.0
    %2083 = vmatpush1.msra.mxu0 0.0
    %2084 = vmatprep.subr.mxu0 0.0
    %2085 = vmatpush1.msra.mxu0 0.0
    %2086 = vmatprep.subr.mxu0 0.0
    %2087 = vmatpush1.msra.mxu0 0.0
    %2088 = vmatprep.subr.mxu0 0.0
    %2089 = vmatpush1.msra.mxu0 0.0
    %2090 = vmatprep.subr.mxu0 0.0
    %2091 = vmatpush1.msra.mxu0 0.0
    %2092 = vmatprep.subr.mxu0 0.0
    %2093 = vmatpush1.msra.mxu0 0.0
    %2094 = vmatprep.subr.mxu0 0.0
    %2095 = vmatpush1.msra.mxu0 0.0
    %2096 = vmatprep.subr.mxu0 0.0
    %2097 = vmatpush1.msra.mxu0 0.0
    %2098 = vmatprep.subr.mxu0 0.0
    %2099 = vmatpush1.msra.mxu0 0.0
    %2100 = vmatprep.mubr.f32.mxu0 0.0
    %2101 = vmatmul.mubr.f32.gmra.mrb[0].mxu0 %v2034
    %v2102 = vpop.f32.mrb[0].mxu0
    %v2103 = vadd.f32 0.0, %v2102
    %v2104 = vpop.f32.mrb[0].mxu0
    %2105 = vdwg.mxu0
    %v2106 = vsel %vm896, %v2015, 0
    %2108 = vmatprep.subr.mxu0 0.0
    %2109 = vmatpush1.msra.mxu0 %v2016
    %2110 = vmatprep.subr.mxu0 0.0
    %2111 = vmatpush1.msra.mxu0 %v2017
    %2112 = vmatprep.subr.mxu0 0.0
    %2113 = vmatpush1.msra.mxu0 %v2018
    %2114 = vmatprep.subr.mxu0 0.0
    %2115 = vmatpush1.msra.mxu0 %v2019
    %2116 = vmatprep.subr.mxu0 0.0
    %2117 = vmatpush1.msra.mxu0 %v2020
    %2118 = vmatprep.subr.mxu0 0.0
    %2119 = vmatpush1.msra.mxu0 %v2021
    %2120 = vmatprep.subr.mxu0 0.0
    %2121 = vmatpush1.msra.mxu0 %v2022
    %2122 = vmatprep.subr.mxu0 0.0
    %2123 = vmatpush1.msra.mxu0 %v2023
    %2124 = vmatprep.subr.mxu0 0.0
    %2125 = vmatpush1.msra.mxu0 0.0
    %2126 = vmatprep.subr.mxu0 0.0
    %2127 = vmatpush1.msra.mxu0 0.0
    %2128 = vmatprep.subr.mxu0 0.0
    %2129 = vmatpush1.msra.mxu0 0.0
    %2130 = vmatprep.subr.mxu0 0.0
    %2131 = vmatpush1.msra.mxu0 0.0
    %2132 = vmatprep.subr.mxu0 0.0
    %2133 = vmatpush1.msra.mxu0 0.0
    %2134 = vmatprep.subr.mxu0 0.0
    %2135 = vmatpush1.msra.mxu0 0.0
    %2136 = vmatprep.subr.mxu0 0.0
    %2137 = vmatpush1.msra.mxu0 0.0
    %2138 = vmatprep.subr.mxu0 0.0
    %2139 = vmatpush1.msra.mxu0 0.0
    %2140 = vmatprep.subr.mxu0 0.0
    %2141 = vmatpush1.msra.mxu0 0.0
    %2142 = vmatprep.subr.mxu0 0.0
    %2143 = vmatpush1.msra.mxu0 0.0
    %2144 = vmatprep.subr.mxu0 0.0
    %2145 = vmatpush1.msra.mxu0 0.0
    %2146 = vmatprep.subr.mxu0 0.0
    %2147 = vmatpush1.msra.mxu0 0.0
    %2148 = vmatprep.subr.mxu0 0.0
    %2149 = vmatpush1.msra.mxu0 0.0
    %2150 = vmatprep.subr.mxu0 0.0
    %2151 = vmatpush1.msra.mxu0 0.0
    %2152 = vmatprep.subr.mxu0 0.0
    %2153 = vmatpush1.msra.mxu0 0.0
    %2154 = vmatprep.subr.mxu0 0.0
    %2155 = vmatpush1.msra.mxu0 0.0
    %2156 = vmatprep.subr.mxu0 0.0
    %2157 = vmatpush1.msra.mxu0 0.0
    %2158 = vmatprep.subr.mxu0 0.0
    %2159 = vmatpush1.msra.mxu0 0.0
    %2160 = vmatprep.subr.mxu0 0.0
    %2161 = vmatpush1.msra.mxu0 0.0
    %2162 = vmatprep.subr.mxu0 0.0
    %2163 = vmatpush1.msra.mxu0 0.0
    %2164 = vmatprep.subr.mxu0 0.0
    %2165 = vmatpush1.msra.mxu0 0.0
    %2166 = vmatprep.subr.mxu0 0.0
    %2167 = vmatpush1.msra.mxu0 0.0
    %2168 = vmatprep.subr.mxu0 0.0
    %2169 = vmatpush1.msra.mxu0 0.0
    %2170 = vmatprep.subr.mxu0 0.0
    %2171 = vmatpush1.msra.mxu0 0.0
    %2172 = vmatprep.mubr.f32.mxu0 0.0
    %2173 = vmatmul.mubr.f32.gmra.mrb[0].mxu0 %v2106
    %v2174 = vpop.f32.mrb[0].mxu0
    %v2175 = vadd.f32 %v2103, %v2174
    %v2176 = vpop.f32.mrb[0].mxu0
    %2177 = vdwg.mxu0
    %v2178 = vld [vmem:[%s5 + $0x80] sm:$0xff]
    %v2179 = vld [vmem:[%s5 + $0x88] sm:$0xff]
    %v2180 = vld [vmem:[%s5 + $0x90] sm:$0xff]
    %v2181 = vld [vmem:[%s5 + $0x98] sm:$0xff]
    %v2182 = vld [vmem:[%s5 + $0xa0] sm:$0xff]
    %v2183 = vld [vmem:[%s5 + $0xa8] sm:$0xff]
    %v2184 = vld [vmem:[%s5 + $0xb0] sm:$0xff]
    %v2185 = vld [vmem:[%s5 + $0xb8] sm:$0xff]
    %v2186 = vrot.slane %v2015, 2
    %v2187 = vsel %vm896, %v2186, 0
    %2189 = vmatprep.subr.mxu0 0.0
    %2190 = vmatpush1.msra.mxu0 %v2178
    %2191 = vmatprep.subr.mxu0 0.0
    %2192 = vmatpush1.msra.mxu0 %v2179
    %2193 = vmatprep.subr.mxu0 0.0
    %2194 = vmatpush1.msra.mxu0 %v2180
    %2195 = vmatprep.subr.mxu0 0.0
    %2196 = vmatpush1.msra.mxu0 %v2181
    %2197 = vmatprep.subr.mxu0 0.0
    %2198 = vmatpush1.msra.mxu0 %v2182
    %2199 = vmatprep.subr.mxu0 0.0
    %2200 = vmatpush1.msra.mxu0 %v2183
    %2201 = vmatprep.subr.mxu0 0.0
    %2202 = vmatpush1.msra.mxu0 %v2184
    %2203 = vmatprep.subr.mxu0 0.0
    %2204 = vmatpush1.msra.mxu0 %v2185
    %2205 = vmatprep.subr.mxu0 0.0
    %2206 = vmatpush1.msra.mxu0 0.0
    %2207 = vmatprep.subr.mxu0 0.0
    %2208 = vmatpush1.msra.mxu0 0.0
    %2209 = vmatprep.subr.mxu0 0.0
    %2210 = vmatpush1.msra.mxu0 0.0
    %2211 = vmatprep.subr.mxu0 0.0
    %2212 = vmatpush1.msra.mxu0 0.0
    %2213 = vmatprep.subr.mxu0 0.0
    %2214 = vmatpush1.msra.mxu0 0.0
    %2215 = vmatprep.subr.mxu0 0.0
    %2216 = vmatpush1.msra.mxu0 0.0
    %2217 = vmatprep.subr.mxu0 0.0
    %2218 = vmatpush1.msra.mxu0 0.0
    %2219 = vmatprep.subr.mxu0 0.0
    %2220 = vmatpush1.msra.mxu0 0.0
    %2221 = vmatprep.subr.mxu0 0.0
    %2222 = vmatpush1.msra.mxu0 0.0
    %2223 = vmatprep.subr.mxu0 0.0
    %2224 = vmatpush1.msra.mxu0 0.0
    %2225 = vmatprep.subr.mxu0 0.0
    %2226 = vmatpush1.msra.mxu0 0.0
    %2227 = vmatprep.subr.mxu0 0.0
    %2228 = vmatpush1.msra.mxu0 0.0
    %2229 = vmatprep.subr.mxu0 0.0
    %2230 = vmatpush1.msra.mxu0 0.0
    %2231 = vmatprep.subr.mxu0 0.0
    %2232 = vmatpush1.msra.mxu0 0.0
    %2233 = vmatprep.subr.mxu0 0.0
    %2234 = vmatpush1.msra.mxu0 0.0
    %2235 = vmatprep.subr.mxu0 0.0
    %2236 = vmatpush1.msra.mxu0 0.0
    %2237 = vmatprep.subr.mxu0 0.0
    %2238 = vmatpush1.msra.mxu0 0.0
    %2239 = vmatprep.subr.mxu0 0.0
    %2240 = vmatpush1.msra.mxu0 0.0
    %2241 = vmatprep.subr.mxu0 0.0
    %2242 = vmatpush1.msra.mxu0 0.0
    %2243 = vmatprep.subr.mxu0 0.0
    %2244 = vmatpush1.msra.mxu0 0.0
    %2245 = vmatprep.subr.mxu0 0.0
    %2246 = vmatpush1.msra.mxu0 0.0
    %2247 = vmatprep.subr.mxu0 0.0
    %2248 = vmatpush1.msra.mxu0 0.0
    %2249 = vmatprep.subr.mxu0 0.0
    %2250 = vmatpush1.msra.mxu0 0.0
    %2251 = vmatprep.subr.mxu0 0.0
    %2252 = vmatpush1.msra.mxu0 0.0
    %2253 = vmatprep.mubr.f32.mxu0 0.0
    %2254 = vmatmul.mubr.f32.gmra.mrb[0].mxu0 %v2187
    %v2255 = vpop.f32.mrb[0].mxu0
    %v2256 = vadd.f32 0.0, %v2255
    %v2257 = vpop.f32.mrb[0].mxu0
    %2258 = vdwg.mxu0
    %v2259 = vadd.f32 %v2175, %v2256
    %v2260 = vld [vmem:[%s5 + $0xc0] sm:$0xff]
    %v2261 = vld [vmem:[%s5 + $0xc8] sm:$0xff]
    %v2262 = vld [vmem:[%s5 + $0xd0] sm:$0xff]
    %v2263 = vld [vmem:[%s5 + $0xd8] sm:$0xff]
    %v2264 = vld [vmem:[%s5 + $0xe0] sm:$0xff]
    %v2265 = vld [vmem:[%s5 + $0xe8] sm:$0xff]
    %v2266 = vld [vmem:[%s5 + $0xf0] sm:$0xff]
    %v2267 = vld [vmem:[%s5 + $0xf8] sm:$0xff]
    %v2268 = vrot.slane %v2015, 3
    %v2269 = vsel %vm896, %v2268, 0
    %2271 = vmatprep.subr.mxu0 0.0
    %2272 = vmatpush1.msra.mxu0 %v2260
    %2273 = vmatprep.subr.mxu0 0.0
    %2274 = vmatpush1.msra.mxu0 %v2261
    %2275 = vmatprep.subr.mxu0 0.0
    %2276 = vmatpush1.msra.mxu0 %v2262
    %2277 = vmatprep.subr.mxu0 0.0
    %2278 = vmatpush1.msra.mxu0 %v2263
    %2279 = vmatprep.subr.mxu0 0.0
    %2280 = vmatpush1.msra.mxu0 %v2264
    %2281 = vmatprep.subr.mxu0 0.0
    %2282 = vmatpush1.msra.mxu0 %v2265
    %2283 = vmatprep.subr.mxu0 0.0
    %2284 = vmatpush1.msra.mxu0 %v2266
    %2285 = vmatprep.subr.mxu0 0.0
    %2286 = vmatpush1.msra.mxu0 %v2267
    %2287 = vmatprep.subr.mxu0 0.0
    %2288 = vmatpush1.msra.mxu0 0.0
    %2289 = vmatprep.subr.mxu0 0.0
    %2290 = vmatpush1.msra.mxu0 0.0
    %2291 = vmatprep.subr.mxu0 0.0
    %2292 = vmatpush1.msra.mxu0 0.0
    %2293 = vmatprep.subr.mxu0 0.0
    %2294 = vmatpush1.msra.mxu0 0.0
    %2295 = vmatprep.subr.mxu0 0.0
    %2296 = vmatpush1.msra.mxu0 0.0
    %2297 = vmatprep.subr.mxu0 0.0
    %2298 = vmatpush1.msra.mxu0 0.0
    %2299 = vmatprep.subr.mxu0 0.0
    %2300 = vmatpush1.msra.mxu0 0.0
    %2301 = vmatprep.subr.mxu0 0.0
    %2302 = vmatpush1.msra.mxu0 0.0
    %2303 = vmatprep.subr.mxu0 0.0
    %2304 = vmatpush1.msra.mxu0 0.0
    %2305 = vmatprep.subr.mxu0 0.0
    %2306 = vmatpush1.msra.mxu0 0.0
    %2307 = vmatprep.subr.mxu0 0.0
    %2308 = vmatpush1.msra.mxu0 0.0
    %2309 = vmatprep.subr.mxu0 0.0
    %2310 = vmatpush1.msra.mxu0 0.0
    %2311 = vmatprep.subr.mxu0 0.0
    %2312 = vmatpush1.msra.mxu0 0.0
    %2313 = vmatprep.subr.mxu0 0.0
    %2314 = vmatpush1.msra.mxu0 0.0
    %2315 = vmatprep.subr.mxu0 0.0
    %2316 = vmatpush1.msra.mxu0 0.0
    %2317 = vmatprep.subr.mxu0 0.0
    %2318 = vmatpush1.msra.mxu0 0.0
    %2319 = vmatprep.subr.mxu0 0.0
    %2320 = vmatpush1.msra.mxu0 0.0
    %2321 = vmatprep.subr.mxu0 0.0
    %2322 = vmatpush1.msra.mxu0 0.0
    %2323 = vmatprep.subr.mxu0 0.0
    %2324 = vmatpush1.msra.mxu0 0.0
    %2325 = vmatprep.subr.mxu0 0.0
    %2326 = vmatpush1.msra.mxu0 0.0
    %2327 = vmatprep.subr.mxu0 0.0
    %2328 = vmatpush1.msra.mxu0 0.0
    %2329 = vmatprep.subr.mxu0 0.0
    %2330 = vmatpush1.msra.mxu0 0.0
    %2331 = vmatprep.subr.mxu0 0.0
    %2332 = vmatpush1.msra.mxu0 0.0
    %2333 = vmatprep.subr.mxu0 0.0
    %2334 = vmatpush1.msra.mxu0 0.0
    %2335 = vmatprep.mubr.f32.mxu0 0.0
    %2336 = vmatmul.mubr.f32.gmra.mrb[0].mxu0 %v2269
    %v2337 = vpop.f32.mrb[0].mxu0
    %v2338 = vadd.f32 0.0, %v2337
    %v2339 = vpop.f32.mrb[0].mxu0
    %2340 = vdwg.mxu0
    %v2341 = vadd.f32 %v2259, %v2338
    %2342 = vst.msk [vmem:[#allocation4 + $0x1] sm:$0x1] %vm1205, %v2341
    %v2343 = vld [vmem:[#allocation4] sm:$0x3]
    %v2344 = vld [vmem:[%s6] sm:$0x1]
    %v2346 = vlaneseq
    %v2347 = vshrl.u32 %v2346, 7
    %v2348 = vsub.s32 0, %v2347
    %v2349 = vrot.slane %v2344, %v2348
    %v2351 = vadd.f32 %v2343, %v2349
    %v2352 = vmax.f32 %v2351, 0.0
    %v2353 = vld [vmem:[%s7] sm:$0xff]
    %v2354 = vld [vmem:[%s7 + $0x8] sm:$0xff]
    %v2355 = vld [vmem:[%s7 + $0x10] sm:$0xff]
    %v2356 = vld [vmem:[%s7 + $0x18] sm:$0xff]
    %v2357 = vld [vmem:[%s7 + $0x20] sm:$0xff]
    %v2358 = vld [vmem:[%s7 + $0x28] sm:$0xff]
    %v2359 = vld [vmem:[%s7 + $0x30] sm:$0xff]
    %v2360 = vld [vmem:[%s7 + $0x38] sm:$0xff]
    %v2361 = vld [vmem:[%s8] sm:$0x1]
    %v2363 = vlaneseq
    %v2364 = vshrl.u32 %v2363, 7
    %v2365 = vsub.s32 0, %v2364
    %v2366 = vrot.slane %v2361, %v2365
    %v2369 = vsel %vm896, %v2352, 0
    %2371 = vmatprep.subr.mxu0 0.0
    %2372 = vmatpush1.msra.mxu0 %v2353
    %2373 = vmatprep.subr.mxu0 0.0
    %2374 = vmatpush1.msra.mxu0 %v2354
    %2375 = vmatprep.subr.mxu0 0.0
    %2376 = vmatpush1.msra.mxu0 %v2355
    %2377 = vmatprep.subr.mxu0 0.0
    %2378 = vmatpush1.msra.mxu0 %v2356
    %2379 = vmatprep.subr.mxu0 0.0
    %2380 = vmatpush1.msra.mxu0 %v2357
    %2381 = vmatprep.subr.mxu0 0.0
    %2382 = vmatpush1.msra.mxu0 %v2358
    %2383 = vmatprep.subr.mxu0 0.0
    %2384 = vmatpush1.msra.mxu0 %v2359
    %2385 = vmatprep.subr.mxu0 0.0
    %2386 = vmatpush1.msra.mxu0 %v2360
    %2387 = vmatprep.subr.mxu0 0.0
    %2388 = vmatpush1.msra.mxu0 0.0
    %2389 = vmatprep.subr.mxu0 0.0
    %2390 = vmatpush1.msra.mxu0 0.0
    %2391 = vmatprep.subr.mxu0 0.0
    %2392 = vmatpush1.msra.mxu0 0.0
    %2393 = vmatprep.subr.mxu0 0.0
    %2394 = vmatpush1.msra.mxu0 0.0
    %2395 = vmatprep.subr.mxu0 0.0
    %2396 = vmatpush1.msra.mxu0 0.0
    %2397 = vmatprep.subr.mxu0 0.0
    %2398 = vmatpush1.msra.mxu0 0.0
    %2399 = vmatprep.subr.mxu0 0.0
    %2400 = vmatpush1.msra.mxu0 0.0
    %2401 = vmatprep.subr.mxu0 0.0
    %2402 = vmatpush1.msra.mxu0 0.0
    %2403 = vmatprep.subr.mxu0 0.0
    %2404 = vmatpush1.msra.mxu0 0.0
    %2405 = vmatprep.subr.mxu0 0.0
    %2406 = vmatpush1.msra.mxu0 0.0
    %2407 = vmatprep.subr.mxu0 0.0
    %2408 = vmatpush1.msra.mxu0 0.0
    %2409 = vmatprep.subr.mxu0 0.0
    %2410 = vmatpush1.msra.mxu0 0.0
    %2411 = vmatprep.subr.mxu0 0.0
    %2412 = vmatpush1.msra.mxu0 0.0
    %2413 = vmatprep.subr.mxu0 0.0
    %2414 = vmatpush1.msra.mxu0 0.0
    %2415 = vmatprep.subr.mxu0 0.0
    %2416 = vmatpush1.msra.mxu0 0.0
    %2417 = vmatprep.subr.mxu0 0.0
    %2418 = vmatpush1.msra.mxu0 0.0
    %2419 = vmatprep.subr.mxu0 0.0
    %2420 = vmatpush1.msra.mxu0 0.0
    %2421 = vmatprep.subr.mxu0 0.0
    %2422 = vmatpush1.msra.mxu0 0.0
    %2423 = vmatprep.subr.mxu0 0.0
    %2424 = vmatpush1.msra.mxu0 0.0
    %2425 = vmatprep.subr.mxu0 0.0
    %2426 = vmatpush1.msra.mxu0 0.0
    %2427 = vmatprep.subr.mxu0 0.0
    %2428 = vmatpush1.msra.mxu0 0.0
    %2429 = vmatprep.subr.mxu0 0.0
    %2430 = vmatpush1.msra.mxu0 0.0
    %2431 = vmatprep.subr.mxu0 0.0
    %2432 = vmatpush1.msra.mxu0 0.0
    %2433 = vmatprep.subr.mxu0 0.0
    %2434 = vmatpush1.msra.mxu0 0.0
    %2435 = vmatprep.mubr.f32.mxu0 0.0
    %2436 = vmatmul.mubr.f32.gmra.mrb[0].mxu0 %v2369
    %v2437 = vpop.f32.mrb[0].mxu0
    %v2438 = vadd.f32 %v2366, %v2437
    %v2439 = vpop.f32.mrb[0].mxu0
    %2440 = vdwg.mxu0
    %vm2441 = vcmask 58368
    %2442 = vst.msk [vmem:[#allocation5] sm:$0x3] %vm2441, %v2438
    // Predicated region
    $region38: #{tpu_custom_call.1} parent=1 // pred_check
      _
    $region39: #{tpu_custom_call.1} parent=1 // pred_check_branch
      %2444 = sbr.rel (0) target = $region41
    $region40: #{tpu_custom_call.1} parent=1 // pred_region
      %s2446 = ssub.s32 32, 32
      %2447 = vsyncadd [#allocation6], %s2446
      %s2449 = sshll.u32 [#allocation5], 4
      %s2450 = int_to_ptr.vmem [resolvable:$true] %s2449
      %2452 = dma.vmem_to_hbm [thread:$0]  %s2450, 32, %s9, [#allocation6]
    $region41: #{tpu_custom_call.1} parent=1 // pred_fallthru
      _
    // Predicated region
    $region42: #{tpu_custom_call.1} parent=1 // pred_check
      _
    $region43: #{tpu_custom_call.1} parent=1 // pred_check_branch
      %2454 = sbr.rel (0) target = $region45
    $region44: #{tpu_custom_call.1} parent=1 // pred_region
      %2455 = dma.done [#allocation6], 32
    $region45: #{tpu_custom_call.1} parent=1 // pred_fallthru
      _
    %2456 = vsyncpa [#allocation6], 1

</llo_original>
